<compile_context>
chip_gen: v7x
topology: tpu7x:2x2x1
jax: 0.10.0
libtpu: 0.0.40
codegen_flags: <defaults>
</compile_context>

<pallas_src>
import jax
import jax.numpy as jnp
from jax.experimental import pallas as pl
from jax.experimental.pallas import tpu as pltpu

_LANE = 128
_SUBLANE = 8
_UNROLL_LIMIT = 32   # fully unroll the recurrence up to this many timesteps


def _round_up(x, m):
    return ((x + m - 1) // m) * m


# --------------------------------------------------------------------------- #
# Kernel
# --------------------------------------------------------------------------- #
def gru_fused_kernel(emb_ref, h0_ref, slen_ref, w_ih_ref, w_hh_ref,
                     gi_bias_ref, b_hh_n_ref, w_lin_ref, b_lin_ref,
                     sig_ref, hlast_ref, gi_scratch):
    """Single-invocation fused GRU sequence + readout kernel.

    emb_ref    : (T*B, E)      time-major embeddings, flattened over (T, B)
    h0_ref     : (B, HP)       initial hidden state, lane-padded to HP (mult of 128)
    slen_ref   : (B, 1) int32  seq_len - 1 (timestep index to select)
    w_ih_ref   : (E, 3*HP)     gate-major padded W_ih^T  (zero-filled pad lanes)
    w_hh_ref   : (HP, 3*HP)    gate-major padded W_hh^T
    gi_bias_ref: (1, 3*HP)     b_ih + (b_hh r/z chunks), gate-major padded
    b_hh_n_ref : (1, HP)       b_hh n-chunk (must stay inside r*(...))
    w_lin_ref  : (HP, OP)      padded Linear weight^T
    b_lin_ref  : (1, OP)       padded Linear bias
    sig_ref    : (B, OP) out   sigmoid(Linear(h at t=seq_len-1))
    hlast_ref  : (B, HP) out   hidden after the last timestep
    gi_scratch : (T*B, 3*HP)   VMEM scratch for the hoisted input projection
    """
    B, HP = h0_ref.shape
    TB = emb_ref.shape[0]
    T = TB // B

    # ---- Phase 1: input projection for all timesteps at once (no serial dep). ----
    gi_scratch[...] = (
        jnp.dot(emb_ref[...], w_ih_ref[...], preferred_element_type=jnp.float32)
        + gi_bias_ref[...])

    w_hh = w_hh_ref[...]                                   # (HP, 3*HP), VMEM resident
    b_hh_n = jnp.broadcast_to(b_hh_n_ref[...], (B, HP))    # hoisted broadcast
    sel_t = jnp.broadcast_to(slen_ref[...], (B, HP))       # hoisted broadcast
    h = h0_ref[...]                                        # (B, HP)
    h_sel = h   # overwritten as soon as t == seq_len-1 (seq_len >= 1)

    def gru_step(gi, h, h_sel, t):
        # gi / gh gate slices are whole 128-lane vreg tiles (no lane shuffles).
        gh = jnp.dot(h, w_hh, preferred_element_type=jnp.float32)
        r = jax.nn.sigmoid(gi[:, :HP] + gh[:, :HP])
        z = jax.nn.sigmoid(gi[:, HP:2 * HP] + gh[:, HP:2 * HP])
        n = jnp.tanh(gi[:, 2 * HP:] + r * (gh[:, 2 * HP:] + b_hh_n))
        h_new = (1.0 - z) * n + z * h
        return h_new, jnp.where(sel_t == t, h_new, h_sel)

    # ---- Phase 2: serial recurrence. ----
    if T <= _UNROLL_LIMIT:
        for t in range(T):                                  # static unroll
            gi = gi_scratch[pl.ds(t * B, B), :]             # static, sublane-aligned
            h, h_sel = gru_step(gi, h, h_sel, t)
    else:
        def body(t, carry):
            h, h_sel = carry
            start = pl.multiple_of(t * B, _SUBLANE)
            gi = gi_scratch[pl.ds(start, B), :]
            return gru_step(gi, h, h_sel, t)
        h, h_sel = jax.lax.fori_loop(0, T, body, (h, h_sel))

    # ---- Fused Linear + sigmoid readout on the seq_len-selected hidden. ----
    logits = (jnp.dot(h_sel, w_lin_ref[...], preferred_element_type=jnp.float32)
              + b_lin_ref[...])
    sig_ref[...] = jax.nn.sigmoid(logits)                   # pad lanes -> 0.5, stripped in glue
    hlast_ref[...] = h


def gru_forward_pallas(emb_2d, h0_p, slen_m1, w_ih_p, w_hh_p, gi_bias, b_hh_n,
                       w_lin_p, b_lin_p):
    """emb_2d: (T*Bp, E) f32; h0_p: (Bp, HP); slen_m1: (Bp, 1) int32.

    Returns (sig (Bp, OP), h_last (Bp, HP))."""
    TB, E = emb_2d.shape
    Bp, HP = h0_p.shape
    G3 = w_ih_p.shape[1]
    OP = w_lin_p.shape[1]

    grid_spec = pltpu.PrefetchScalarGridSpec(
        num_scalar_prefetch=0,
        grid=(1,),
        in_specs=[
            pl.BlockSpec((TB, E), lambda i: (0, 0)),        # embeddings (all timesteps)
            pl.BlockSpec((Bp, HP), lambda i: (0, 0)),       # h0 (padded)
            pl.BlockSpec((Bp, 1), lambda i: (0, 0)),        # seq_len - 1
            pl.BlockSpec((E, G3), lambda i: (0, 0)),        # W_ih^T (gate-major padded)
            pl.BlockSpec((HP, G3), lambda i: (0, 0)),       # W_hh^T (gate-major padded)
            pl.BlockSpec((1, G3), lambda i: (0, 0)),        # b_ih + b_hh[r,z]
            pl.BlockSpec((1, HP), lambda i: (0, 0)),        # b_hh[n]
            pl.BlockSpec((HP, OP), lambda i: (0, 0)),       # Linear weight^T (padded)
            pl.BlockSpec((1, OP), lambda i: (0, 0)),        # Linear bias (padded)
        ],
        out_specs=[
            pl.BlockSpec((Bp, OP), lambda i: (0, 0)),       # sigmoid readout
            pl.BlockSpec((Bp, HP), lambda i: (0, 0)),       # final hidden
        ],
        scratch_shapes=[pltpu.VMEM((TB, G3), jnp.float32)],
    )

    return pl.pallas_call(
        gru_fused_kernel,
        out_shape=(jax.ShapeDtypeStruct((Bp, OP), jnp.float32),
                   jax.ShapeDtypeStruct((Bp, HP), jnp.float32)),
        grid_spec=grid_spec,
        compiler_params=pltpu.CompilerParams(
            dimension_semantics=("arbitrary",)),
    )(emb_2d, h0_p, slen_m1, w_ih_p, w_hh_p, gi_bias, b_hh_n, w_lin_p, b_lin_p)


# --------------------------------------------------------------------------- #
# Parameter preparation (done once, outside the forward hot path)
# --------------------------------------------------------------------------- #
def prepare_padded_params(raw):
    """raw params use PyTorch layouts:
       embedding (V,E), w_ih (3H,E), b_ih (3H,), w_hh (3H,H), b_hh (3H,),
       w_lin (O,H), b_lin (O,)."""
    H = raw["w_hh"].shape[1]
    E = raw["w_ih"].shape[1]
    O = raw["w_lin"].shape[0]
    HP = _round_up(H, _LANE)
    OP = _round_up(O, _LANE)
    G3 = 3 * HP

    w_ih_t = raw["w_ih"].T.astype(jnp.float32)   # (E, 3H)
    w_hh_t = raw["w_hh"].T.astype(jnp.float32)   # (H, 3H)
    b_ih = raw["b_ih"].astype(jnp.float32)       # (3H,)
    b_hh = raw["b_hh"].astype(jnp.float32)       # (3H,)

    # Gate-major padded layouts: gate g occupies lanes [g*HP, g*HP+H), rest zero.
    w_ih_p = jnp.zeros((E, G3), jnp.float32)
    w_hh_p = jnp.zeros((HP, G3), jnp.float32)
    gi_bias = jnp.zeros((1, G3), jnp.float32)
    for g in range(3):
        w_ih_p = w_ih_p.at[:, g * HP:g * HP + H].set(w_ih_t[:, g * H:(g + 1) * H])
        w_hh_p = w_hh_p.at[:H, g * HP:g * HP + H].set(w_hh_t[:, g * H:(g + 1) * H])
        gi_bias = gi_bias.at[0, g * HP:g * HP + H].set(b_ih[g * H:(g + 1) * H])
    # Fold b_hh's r and z chunks into the input-projection bias; the n chunk must
    # NOT be folded (it lives inside r * (W_hn h + b_hn)).
    for g in range(2):
        gi_bias = gi_bias.at[0, g * HP:g * HP + H].add(b_hh[g * H:(g + 1) * H])
    b_hh_n = jnp.zeros((1, HP), jnp.float32).at[0, :H].set(b_hh[2 * H:])

    w_lin_p = jnp.zeros((HP, OP), jnp.float32).at[:H, :O].set(
        raw["w_lin"].T.astype(jnp.float32))
    b_lin_p = jnp.zeros((1, OP), jnp.float32).at[0, :O].set(
        raw["b_lin"].astype(jnp.float32))

    return dict(embedding=raw["embedding"].astype(jnp.float32),
                w_ih_p=w_ih_p, w_hh_p=w_hh_p, gi_bias=gi_bias, b_hh_n=b_hh_n,
                w_lin_p=w_lin_p, b_lin_p=b_lin_p,
                hidden_dim=H, output_dim=O, hidden_pad=HP)


# --------------------------------------------------------------------------- #
# Forward wrapper (mirrors Model.forward)
# --------------------------------------------------------------------------- #
def model_forward(x_tokens, hidden, seq_len, pp):
    """Returns (sig_out (B,), hidden (B, H))."""
    B, T = x_tokens.shape
    H = pp["hidden_dim"]
    O = pp["output_dim"]
    HP = pp["hidden_pad"]

    Bp = _round_up(B, _SUBLANE)
    pad = Bp - B

    # Clamp seq_len to [1, T] (PyTorch indexing would error outside this range).
    slen_m1 = (jnp.clip(seq_len, 1, T) - 1).astype(jnp.int32)

    # Pad the int token ids / seq_len BEFORE the gather (avoids copying the f32 slab).
    if pad:
        x_p = jnp.pad(x_tokens, ((0, pad), (0, 0)))          # token 0 for pad rows
        slen_m1 = jnp.pad(slen_m1, ((0, pad),))               # pad rows select t=0 (stripped later)
    else:
        x_p = x_tokens
    slen_m1 = slen_m1.reshape(Bp, 1)

    # Hidden state, zero-padded in both batch rows and lanes (pad lanes must be 0).
    hidden_p = jnp.zeros((Bp, HP), jnp.float32).at[:B, :H].set(hidden)

    # Embedding gather directly time-major and flattened: (T*Bp, E).
    tok_flat = jnp.transpose(x_p, (1, 0)).reshape(-1)
    emb_2d = pp["embedding"][tok_flat]

    sig_pad, h_last_pad = gru_forward_pallas(
        emb_2d, hidden_p, slen_m1,
        pp["w_ih_p"], pp["w_hh_p"], pp["gi_bias"], pp["b_hh_n"],
        pp["w_lin_p"], pp["b_lin_p"])

    sig = sig_pad[:B, :O][:, -1]          # == sigmoid(out).view(B, -1)[:, -1]
    h_last = h_last_pad[:B, :H]
    return sig, h_last


# --------------------------------------------------------------------------- #
# Pure-JAX reference (replicates the PyTorch GRUCell loop exactly)
# --------------------------------------------------------------------------- #
def reference_forward(x_tokens, hidden, seq_len, raw):
    B, T = x_tokens.shape
    H = raw["w_hh"].shape[1]
    embeds = raw["embedding"][x_tokens]                      # (B, T, E)
    w_ih_t, w_hh_t = raw["w_ih"].T, raw["w_hh"].T
    b_ih, b_hh = raw["b_ih"], raw["b_hh"]
    w_lin_t, b_lin = raw["w_lin"].T, raw["b_lin"]

    def step(h, x_t):
        gi = x_t @ w_ih_t + b_ih
        gh = h @ w_hh_t + b_hh
        r = jax.nn.sigmoid(gi[:, :H] + gh[:, :H])
        z = jax.nn.sigmoid(gi[:, H:2 * H] + gh[:, H:2 * H])
        n = jnp.tanh(gi[:, 2 * H:] + r * gh[:, 2 * H:])
        h_new = (1.0 - z) * n + z * h
        return h_new, h_new @ w_lin_t + b_lin

    h_last, outs = jax.lax.scan(step, hidden, jnp.transpose(embeds, (1, 0, 2)))
    sel = outs[seq_len - 1, jnp.arange(B), :]
    sig = jax.nn.sigmoid(sel).reshape(B, -1)[:, -1]
    return sig, h_last


if __name__ == "__main__":
    # Small shapes consistent with the module.
    B, T, E, H, O, V = 2, 8, 16, 32, 1, 20

    key = jax.random.PRNGKey(0)
    k_emb, k_wih, k_whh, k_bih, k_bhh, k_wl, k_bl, k_x = jax.random.split(key, 8)

    raw_params = {
        "embedding": jax.random.normal(k_emb, (V, E), jnp.float32) * 0.1,
        "w_ih": jax.random.normal(k_wih, (3 * H, E), jnp.float32) * 0.1,   # PyTorch layout
        "w_hh": jax.random.normal(k_whh, (3 * H, H), jnp.float32) * 0.1,
        "b_ih": jax.random.normal(k_bih, (3 * H,), jnp.float32) * 0.1,
        "b_hh": jax.random.normal(k_bhh, (3 * H,), jnp.float32) * 0.1,
        "w_lin": jax.random.normal(k_wl, (O, H), jnp.float32) * 0.1,
        "b_lin": jax.random.normal(k_bl, (O,), jnp.float32) * 0.1,
    }
    padded_params = prepare_padded_params(raw_params)

    x_tokens = jax.random.randint(k_x, (B, T), 0, V)          # int token ids
    hidden0 = jnp.zeros((B, H), jnp.float32)                  # Model.init_hidden
    seq_len = jnp.array([T, T // 2], jnp.int32)               # valid lengths in [1, T]

    sig_out, h_out = model_forward(x_tokens, hidden0, seq_len, padded_params)
    sig_out, h_out = jax.block_until_ready((sig_out, h_out))

    sig_ref, h_ref = reference_forward(x_tokens, hidden0, seq_len, raw_params)
    assert sig_out.shape == (B,) and h_out.shape == (B, H)
    assert jnp.allclose(sig_out, sig_ref, rtol=1e-4, atol=1e-4)
    assert jnp.allclose(h_out, h_ref, rtol=1e-4, atol=1e-4)

    print("KERNEL_OK")
</pallas_src>

<mosaic_0001>
module attributes {stable_mosaic.version = 11 : i64} {
  func.func @gru_fused_kernel(%arg0: i32, %arg1: memref<64x16xf32, #tpu.memory_space<vmem>>, %arg2: memref<8x128xf32, #tpu.memory_space<vmem>>, %arg3: memref<8x1xi32, #tpu.memory_space<vmem>>, %arg4: memref<16x384xf32, #tpu.memory_space<vmem>>, %arg5: memref<128x384xf32, #tpu.memory_space<vmem>>, %arg6: memref<1x384xf32, #tpu.memory_space<vmem>>, %arg7: memref<1x128xf32, #tpu.memory_space<vmem>>, %arg8: memref<128x128xf32, #tpu.memory_space<vmem>>, %arg9: memref<1x128xf32, #tpu.memory_space<vmem>>, %arg10: memref<8x128xf32, #tpu.memory_space<vmem>>, %arg11: memref<8x128xf32, #tpu.memory_space<vmem>>, %arg12: memref<64x384xf32, #tpu.memory_space<vmem>>) attributes {dimension_semantics = [#tpu.dimension_semantics<arbitrary>], iteration_bounds = array<i64: 1>, scalar_prefetch = 0 : i64, scratch_operands = 1 : i64, tpu.core_type = #tpu.core_type<tc>, window_params = [{pipeline_mode = #tpu.pipeline_mode<synchronous>, transform_indices = @transform_0, window_bounds = array<i64: 64, 16>}, {pipeline_mode = #tpu.pipeline_mode<synchronous>, transform_indices = @transform_1, window_bounds = array<i64: 8, 128>}, {pipeline_mode = #tpu.pipeline_mode<synchronous>, transform_indices = @transform_2, window_bounds = array<i64: 8, 1>}, {pipeline_mode = #tpu.pipeline_mode<synchronous>, transform_indices = @transform_3, window_bounds = array<i64: 16, 384>}, {pipeline_mode = #tpu.pipeline_mode<synchronous>, transform_indices = @transform_4, window_bounds = array<i64: 128, 384>}, {pipeline_mode = #tpu.pipeline_mode<synchronous>, transform_indices = @transform_5, window_bounds = array<i64: 1, 384>}, {pipeline_mode = #tpu.pipeline_mode<synchronous>, transform_indices = @transform_6, window_bounds = array<i64: 1, 128>}, {pipeline_mode = #tpu.pipeline_mode<synchronous>, transform_indices = @transform_7, window_bounds = array<i64: 128, 128>}, {pipeline_mode = #tpu.pipeline_mode<synchronous>, transform_indices = @transform_8, window_bounds = array<i64: 1, 128>}, {pipeline_mode = #tpu.pipeline_mode<synchronous>, transform_indices = @transform_9, window_bounds = array<i64: 8, 128>}, {pipeline_mode = #tpu.pipeline_mode<synchronous>, transform_indices = @transform_10, window_bounds = array<i64: 8, 128>}]} {
    %c0 = arith.constant 0 : index
    %c0_0 = arith.constant 0 : index
    %0 = vector.load %arg1[%c0, %c0_0] : memref<64x16xf32, #tpu.memory_space<vmem>>, vector<64x16xf32>
    %c0_1 = arith.constant 0 : index
    %c0_2 = arith.constant 0 : index
    %1 = vector.load %arg4[%c0_1, %c0_2] : memref<16x384xf32, #tpu.memory_space<vmem>>, vector<16x384xf32>
    %cst = arith.constant dense<0.000000e+00> : vector<64x384xf32>
    %2 = tpu.matmul %0, %1, %cst {dimension_numbers = #tpu.dot_dimension_numbers<[1], [0], [0], [1], [0, 0, 1, 1], [], []>} : vector<64x16xf32>, vector<16x384xf32>, vector<64x384xf32> -> vector<64x384xf32>
    %c0_3 = arith.constant 0 : index
    %c0_4 = arith.constant 0 : index
    %3 = vector.load %arg6[%c0_3, %c0_4] : memref<1x384xf32, #tpu.memory_space<vmem>>, vector<1x384xf32>
    %4 = vector.broadcast %3 : vector<1x384xf32> to vector<64x384xf32>
    %5 = arith.addf %2, %4 : vector<64x384xf32>
    %c0_5 = arith.constant 0 : index
    %c0_6 = arith.constant 0 : index
    %6 = vector.load %arg12[%c0_5, %c0_6] : memref<64x384xf32, #tpu.memory_space<vmem>>, vector<64x384xf32>
    tpu.vector_store %arg12[%c0_5, %c0_6], %5 {strides = array<i32>} : memref<64x384xf32, #tpu.memory_space<vmem>>, vector<64x384xf32>,
    %c0_7 = arith.constant 0 : index
    %c0_8 = arith.constant 0 : index
    %7 = vector.load %arg5[%c0_7, %c0_8] : memref<128x384xf32, #tpu.memory_space<vmem>>, vector<128x384xf32>
    %c0_9 = arith.constant 0 : index
    %c0_10 = arith.constant 0 : index
    %8 = vector.load %arg7[%c0_9, %c0_10] : memref<1x128xf32, #tpu.memory_space<vmem>>, vector<1x128xf32>
    %9 = vector.shape_cast %8 : vector<1x128xf32> to vector<1x128xf32>
    %10 = vector.broadcast %9 : vector<1x128xf32> to vector<8x128xf32>
    %c0_11 = arith.constant 0 : index
    %c0_12 = arith.constant 0 : index
    %11 = vector.load %arg3[%c0_11, %c0_12] : memref<8x1xi32, #tpu.memory_space<vmem>>, vector<8x1xi32>
    %12 = vector.shape_cast %11 : vector<8x1xi32> to vector<8x1xi32>
    %13 = vector.broadcast %12 : vector<8x1xi32> to vector<8x128xi32>
    %c0_13 = arith.constant 0 : index
    %c0_14 = arith.constant 0 : index
    %14 = vector.load %arg2[%c0_13, %c0_14] : memref<8x128xf32, #tpu.memory_space<vmem>>, vector<8x128xf32>
    %c0_15 = arith.constant 0 : index
    %c0_16 = arith.constant 0 : index
    %15 = vector.load %arg12[%c0_15, %c0_16] : memref<64x384xf32, #tpu.memory_space<vmem>>, vector<8x384xf32>
    %cst_17 = arith.constant dense<0.000000e+00> : vector<8x384xf32>
    %16 = tpu.matmul %14, %7, %cst_17 {dimension_numbers = #tpu.dot_dimension_numbers<[1], [0], [0], [1], [0, 0, 1, 1], [], []>} : vector<8x128xf32>, vector<128x384xf32>, vector<8x384xf32> -> vector<8x384xf32>
    %17 = vector.extract_strided_slice %15 {offsets = [0, 0], sizes = [8, 128], strides = [1, 1]} : vector<8x384xf32> to vector<8x128xf32>
    %18 = vector.extract_strided_slice %16 {offsets = [0, 0], sizes = [8, 128], strides = [1, 1]} : vector<8x384xf32> to vector<8x128xf32>
    %19 = arith.addf %17, %18 : vector<8x128xf32>
    %20 = arith.negf %19 : vector<8x128xf32>
    %21 = math.exp %20 : vector<8x128xf32>
    %cst_18 = arith.constant 1.000000e+00 : f32
    %22 = vector.broadcast %cst_18 : f32 to vector<8x128xf32>
    %23 = arith.addf %22, %21 : vector<8x128xf32>
    %24 = arith.divf %22, %23 : vector<8x128xf32>
    %25 = vector.extract_strided_slice %15 {offsets = [0, 128], sizes = [8, 128], strides = [1, 1]} : vector<8x384xf32> to vector<8x128xf32>
    %26 = vector.extract_strided_slice %16 {offsets = [0, 128], sizes = [8, 128], strides = [1, 1]} : vector<8x384xf32> to vector<8x128xf32>
    %27 = arith.addf %25, %26 : vector<8x128xf32>
    %28 = arith.negf %27 : vector<8x128xf32>
    %29 = math.exp %28 : vector<8x128xf32>
    %cst_19 = arith.constant 1.000000e+00 : f32
    %30 = vector.broadcast %cst_19 : f32 to vector<8x128xf32>
    %31 = arith.addf %30, %29 : vector<8x128xf32>
    %32 = arith.divf %30, %31 : vector<8x128xf32>
    %33 = vector.extract_strided_slice %15 {offsets = [0, 256], sizes = [8, 128], strides = [1, 1]} : vector<8x384xf32> to vector<8x128xf32>
    %34 = vector.extract_strided_slice %16 {offsets = [0, 256], sizes = [8, 128], strides = [1, 1]} : vector<8x384xf32> to vector<8x128xf32>
    %35 = arith.addf %34, %10 : vector<8x128xf32>
    %36 = arith.mulf %24, %35 : vector<8x128xf32>
    %37 = arith.addf %33, %36 : vector<8x128xf32>
    %38 = math.tanh %37 : vector<8x128xf32>
    %cst_20 = arith.constant 1.000000e+00 : f32
    %39 = vector.broadcast %cst_20 : f32 to vector<8x128xf32>
    %40 = arith.subf %39, %32 : vector<8x128xf32>
    %41 = arith.mulf %40, %38 : vector<8x128xf32>
    %42 = arith.mulf %32, %14 : vector<8x128xf32>
    %43 = arith.addf %41, %42 : vector<8x128xf32>
    %c0_i32 = arith.constant 0 : i32
    %44 = vector.broadcast %c0_i32 : i32 to vector<8x128xi32>
    %45 = arith.cmpi eq, %13, %44 : vector<8x128xi32>
    %46 = arith.select %45, %43, %14 : vector<8x128xi1>, vector<8x128xf32>
    %c8 = arith.constant 8 : index
    %c0_21 = arith.constant 0 : index
    %47 = vector.load %arg12[%c8, %c0_21] : memref<64x384xf32, #tpu.memory_space<vmem>>, vector<8x384xf32>
    %cst_22 = arith.constant dense<0.000000e+00> : vector<8x384xf32>
    %48 = tpu.matmul %43, %7, %cst_22 {dimension_numbers = #tpu.dot_dimension_numbers<[1], [0], [0], [1], [0, 0, 1, 1], [], []>} : vector<8x128xf32>, vector<128x384xf32>, vector<8x384xf32> -> vector<8x384xf32>
    %49 = vector.extract_strided_slice %47 {offsets = [0, 0], sizes = [8, 128], strides = [1, 1]} : vector<8x384xf32> to vector<8x128xf32>
    %50 = vector.extract_strided_slice %48 {offsets = [0, 0], sizes = [8, 128], strides = [1, 1]} : vector<8x384xf32> to vector<8x128xf32>
    %51 = arith.addf %49, %50 : vector<8x128xf32>
    %52 = arith.negf %51 : vector<8x128xf32>
    %53 = math.exp %52 : vector<8x128xf32>
    %cst_23 = arith.constant 1.000000e+00 : f32
    %54 = vector.broadcast %cst_23 : f32 to vector<8x128xf32>
    %55 = arith.addf %54, %53 : vector<8x128xf32>
    %56 = arith.divf %54, %55 : vector<8x128xf32>
    %57 = vector.extract_strided_slice %47 {offsets = [0, 128], sizes = [8, 128], strides = [1, 1]} : vector<8x384xf32> to vector<8x128xf32>
    %58 = vector.extract_strided_slice %48 {offsets = [0, 128], sizes = [8, 128], strides = [1, 1]} : vector<8x384xf32> to vector<8x128xf32>
    %59 = arith.addf %57, %58 : vector<8x128xf32>
    %60 = arith.negf %59 : vector<8x128xf32>
    %61 = math.exp %60 : vector<8x128xf32>
    %cst_24 = arith.constant 1.000000e+00 : f32
    %62 = vector.broadcast %cst_24 : f32 to vector<8x128xf32>
    %63 = arith.addf %62, %61 : vector<8x128xf32>
    %64 = arith.divf %62, %63 : vector<8x128xf32>
    %65 = vector.extract_strided_slice %47 {offsets = [0, 256], sizes = [8, 128], strides = [1, 1]} : vector<8x384xf32> to vector<8x128xf32>
    %66 = vector.extract_strided_slice %48 {offsets = [0, 256], sizes = [8, 128], strides = [1, 1]} : vector<8x384xf32> to vector<8x128xf32>
    %67 = arith.addf %66, %10 : vector<8x128xf32>
    %68 = arith.mulf %56, %67 : vector<8x128xf32>
    %69 = arith.addf %65, %68 : vector<8x128xf32>
    %70 = math.tanh %69 : vector<8x128xf32>
    %cst_25 = arith.constant 1.000000e+00 : f32
    %71 = vector.broadcast %cst_25 : f32 to vector<8x128xf32>
    %72 = arith.subf %71, %64 : vector<8x128xf32>
    %73 = arith.mulf %72, %70 : vector<8x128xf32>
    %74 = arith.mulf %64, %43 : vector<8x128xf32>
    %75 = arith.addf %73, %74 : vector<8x128xf32>
    %c1_i32 = arith.constant 1 : i32
    %76 = vector.broadcast %c1_i32 : i32 to vector<8x128xi32>
    %77 = arith.cmpi eq, %13, %76 : vector<8x128xi32>
    %78 = arith.select %77, %75, %46 : vector<8x128xi1>, vector<8x128xf32>
    %c16 = arith.constant 16 : index
    %c0_26 = arith.constant 0 : index
    %79 = vector.load %arg12[%c16, %c0_26] : memref<64x384xf32, #tpu.memory_space<vmem>>, vector<8x384xf32>
    %cst_27 = arith.constant dense<0.000000e+00> : vector<8x384xf32>
    %80 = tpu.matmul %75, %7, %cst_27 {dimension_numbers = #tpu.dot_dimension_numbers<[1], [0], [0], [1], [0, 0, 1, 1], [], []>} : vector<8x128xf32>, vector<128x384xf32>, vector<8x384xf32> -> vector<8x384xf32>
    %81 = vector.extract_strided_slice %79 {offsets = [0, 0], sizes = [8, 128], strides = [1, 1]} : vector<8x384xf32> to vector<8x128xf32>
    %82 = vector.extract_strided_slice %80 {offsets = [0, 0], sizes = [8, 128], strides = [1, 1]} : vector<8x384xf32> to vector<8x128xf32>
    %83 = arith.addf %81, %82 : vector<8x128xf32>
    %84 = arith.negf %83 : vector<8x128xf32>
    %85 = math.exp %84 : vector<8x128xf32>
    %cst_28 = arith.constant 1.000000e+00 : f32
    %86 = vector.broadcast %cst_28 : f32 to vector<8x128xf32>
    %87 = arith.addf %86, %85 : vector<8x128xf32>
    %88 = arith.divf %86, %87 : vector<8x128xf32>
    %89 = vector.extract_strided_slice %79 {offsets = [0, 128], sizes = [8, 128], strides = [1, 1]} : vector<8x384xf32> to vector<8x128xf32>
    %90 = vector.extract_strided_slice %80 {offsets = [0, 128], sizes = [8, 128], strides = [1, 1]} : vector<8x384xf32> to vector<8x128xf32>
    %91 = arith.addf %89, %90 : vector<8x128xf32>
    %92 = arith.negf %91 : vector<8x128xf32>
    %93 = math.exp %92 : vector<8x128xf32>
    %cst_29 = arith.constant 1.000000e+00 : f32
    %94 = vector.broadcast %cst_29 : f32 to vector<8x128xf32>
    %95 = arith.addf %94, %93 : vector<8x128xf32>
    %96 = arith.divf %94, %95 : vector<8x128xf32>
    %97 = vector.extract_strided_slice %79 {offsets = [0, 256], sizes = [8, 128], strides = [1, 1]} : vector<8x384xf32> to vector<8x128xf32>
    %98 = vector.extract_strided_slice %80 {offsets = [0, 256], sizes = [8, 128], strides = [1, 1]} : vector<8x384xf32> to vector<8x128xf32>
    %99 = arith.addf %98, %10 : vector<8x128xf32>
    %100 = arith.mulf %88, %99 : vector<8x128xf32>
    %101 = arith.addf %97, %100 : vector<8x128xf32>
    %102 = math.tanh %101 : vector<8x128xf32>
    %cst_30 = arith.constant 1.000000e+00 : f32
    %103 = vector.broadcast %cst_30 : f32 to vector<8x128xf32>
    %104 = arith.subf %103, %96 : vector<8x128xf32>
    %105 = arith.mulf %104, %102 : vector<8x128xf32>
    %106 = arith.mulf %96, %75 : vector<8x128xf32>
    %107 = arith.addf %105, %106 : vector<8x128xf32>
    %c2_i32 = arith.constant 2 : i32
    %108 = vector.broadcast %c2_i32 : i32 to vector<8x128xi32>
    %109 = arith.cmpi eq, %13, %108 : vector<8x128xi32>
    %110 = arith.select %109, %107, %78 : vector<8x128xi1>, vector<8x128xf32>
    %c24 = arith.constant 24 : index
    %c0_31 = arith.constant 0 : index
    %111 = vector.load %arg12[%c24, %c0_31] : memref<64x384xf32, #tpu.memory_space<vmem>>, vector<8x384xf32>
    %cst_32 = arith.constant dense<0.000000e+00> : vector<8x384xf32>
    %112 = tpu.matmul %107, %7, %cst_32 {dimension_numbers = #tpu.dot_dimension_numbers<[1], [0], [0], [1], [0, 0, 1, 1], [], []>} : vector<8x128xf32>, vector<128x384xf32>, vector<8x384xf32> -> vector<8x384xf32>
    %113 = vector.extract_strided_slice %111 {offsets = [0, 0], sizes = [8, 128], strides = [1, 1]} : vector<8x384xf32> to vector<8x128xf32>
    %114 = vector.extract_strided_slice %112 {offsets = [0, 0], sizes = [8, 128], strides = [1, 1]} : vector<8x384xf32> to vector<8x128xf32>
    %115 = arith.addf %113, %114 : vector<8x128xf32>
    %116 = arith.negf %115 : vector<8x128xf32>
    %117 = math.exp %116 : vector<8x128xf32>
    %cst_33 = arith.constant 1.000000e+00 : f32
    %118 = vector.broadcast %cst_33 : f32 to vector<8x128xf32>
    %119 = arith.addf %118, %117 : vector<8x128xf32>
    %120 = arith.divf %118, %119 : vector<8x128xf32>
    %121 = vector.extract_strided_slice %111 {offsets = [0, 128], sizes = [8, 128], strides = [1, 1]} : vector<8x384xf32> to vector<8x128xf32>
    %122 = vector.extract_strided_slice %112 {offsets = [0, 128], sizes = [8, 128], strides = [1, 1]} : vector<8x384xf32> to vector<8x128xf32>
    %123 = arith.addf %121, %122 : vector<8x128xf32>
    %124 = arith.negf %123 : vector<8x128xf32>
    %125 = math.exp %124 : vector<8x128xf32>
    %cst_34 = arith.constant 1.000000e+00 : f32
    %126 = vector.broadcast %cst_34 : f32 to vector<8x128xf32>
    %127 = arith.addf %126, %125 : vector<8x128xf32>
    %128 = arith.divf %126, %127 : vector<8x128xf32>
    %129 = vector.extract_strided_slice %111 {offsets = [0, 256], sizes = [8, 128], strides = [1, 1]} : vector<8x384xf32> to vector<8x128xf32>
    %130 = vector.extract_strided_slice %112 {offsets = [0, 256], sizes = [8, 128], strides = [1, 1]} : vector<8x384xf32> to vector<8x128xf32>
    %131 = arith.addf %130, %10 : vector<8x128xf32>
    %132 = arith.mulf %120, %131 : vector<8x128xf32>
    %133 = arith.addf %129, %132 : vector<8x128xf32>
    %134 = math.tanh %133 : vector<8x128xf32>
    %cst_35 = arith.constant 1.000000e+00 : f32
    %135 = vector.broadcast %cst_35 : f32 to vector<8x128xf32>
    %136 = arith.subf %135, %128 : vector<8x128xf32>
    %137 = arith.mulf %136, %134 : vector<8x128xf32>
    %138 = arith.mulf %128, %107 : vector<8x128xf32>
    %139 = arith.addf %137, %138 : vector<8x128xf32>
    %c3_i32 = arith.constant 3 : i32
    %140 = vector.broadcast %c3_i32 : i32 to vector<8x128xi32>
    %141 = arith.cmpi eq, %13, %140 : vector<8x128xi32>
    %142 = arith.select %141, %139, %110 : vector<8x128xi1>, vector<8x128xf32>
    %c32 = arith.constant 32 : index
    %c0_36 = arith.constant 0 : index
    %143 = vector.load %arg12[%c32, %c0_36] : memref<64x384xf32, #tpu.memory_space<vmem>>, vector<8x384xf32>
    %cst_37 = arith.constant dense<0.000000e+00> : vector<8x384xf32>
    %144 = tpu.matmul %139, %7, %cst_37 {dimension_numbers = #tpu.dot_dimension_numbers<[1], [0], [0], [1], [0, 0, 1, 1], [], []>} : vector<8x128xf32>, vector<128x384xf32>, vector<8x384xf32> -> vector<8x384xf32>
    %145 = vector.extract_strided_slice %143 {offsets = [0, 0], sizes = [8, 128], strides = [1, 1]} : vector<8x384xf32> to vector<8x128xf32>
    %146 = vector.extract_strided_slice %144 {offsets = [0, 0], sizes = [8, 128], strides = [1, 1]} : vector<8x384xf32> to vector<8x128xf32>
    %147 = arith.addf %145, %146 : vector<8x128xf32>
    %148 = arith.negf %147 : vector<8x128xf32>
    %149 = math.exp %148 : vector<8x128xf32>
    %cst_38 = arith.constant 1.000000e+00 : f32
    %150 = vector.broadcast %cst_38 : f32 to vector<8x128xf32>
    %151 = arith.addf %150, %149 : vector<8x128xf32>
    %152 = arith.divf %150, %151 : vector<8x128xf32>
    %153 = vector.extract_strided_slice %143 {offsets = [0, 128], sizes = [8, 128], strides = [1, 1]} : vector<8x384xf32> to vector<8x128xf32>
    %154 = vector.extract_strided_slice %144 {offsets = [0, 128], sizes = [8, 128], strides = [1, 1]} : vector<8x384xf32> to vector<8x128xf32>
    %155 = arith.addf %153, %154 : vector<8x128xf32>
    %156 = arith.negf %155 : vector<8x128xf32>
    %157 = math.exp %156 : vector<8x128xf32>
    %cst_39 = arith.constant 1.000000e+00 : f32
    %158 = vector.broadcast %cst_39 : f32 to vector<8x128xf32>
    %159 = arith.addf %158, %157 : vector<8x128xf32>
    %160 = arith.divf %158, %159 : vector<8x128xf32>
    %161 = vector.extract_strided_slice %143 {offsets = [0, 256], sizes = [8, 128], strides = [1, 1]} : vector<8x384xf32> to vector<8x128xf32>
    %162 = vector.extract_strided_slice %144 {offsets = [0, 256], sizes = [8, 128], strides = [1, 1]} : vector<8x384xf32> to vector<8x128xf32>
    %163 = arith.addf %162, %10 : vector<8x128xf32>
    %164 = arith.mulf %152, %163 : vector<8x128xf32>
    %165 = arith.addf %161, %164 : vector<8x128xf32>
    %166 = math.tanh %165 : vector<8x128xf32>
    %cst_40 = arith.constant 1.000000e+00 : f32
    %167 = vector.broadcast %cst_40 : f32 to vector<8x128xf32>
    %168 = arith.subf %167, %160 : vector<8x128xf32>
    %169 = arith.mulf %168, %166 : vector<8x128xf32>
    %170 = arith.mulf %160, %139 : vector<8x128xf32>
    %171 = arith.addf %169, %170 : vector<8x128xf32>
    %c4_i32 = arith.constant 4 : i32
    %172 = vector.broadcast %c4_i32 : i32 to vector<8x128xi32>
    %173 = arith.cmpi eq, %13, %172 : vector<8x128xi32>
    %174 = arith.select %173, %171, %142 : vector<8x128xi1>, vector<8x128xf32>
    %c40 = arith.constant 40 : index
    %c0_41 = arith.constant 0 : index
    %175 = vector.load %arg12[%c40, %c0_41] : memref<64x384xf32, #tpu.memory_space<vmem>>, vector<8x384xf32>
    %cst_42 = arith.constant dense<0.000000e+00> : vector<8x384xf32>
    %176 = tpu.matmul %171, %7, %cst_42 {dimension_numbers = #tpu.dot_dimension_numbers<[1], [0], [0], [1], [0, 0, 1, 1], [], []>} : vector<8x128xf32>, vector<128x384xf32>, vector<8x384xf32> -> vector<8x384xf32>
    %177 = vector.extract_strided_slice %175 {offsets = [0, 0], sizes = [8, 128], strides = [1, 1]} : vector<8x384xf32> to vector<8x128xf32>
    %178 = vector.extract_strided_slice %176 {offsets = [0, 0], sizes = [8, 128], strides = [1, 1]} : vector<8x384xf32> to vector<8x128xf32>
    %179 = arith.addf %177, %178 : vector<8x128xf32>
    %180 = arith.negf %179 : vector<8x128xf32>
    %181 = math.exp %180 : vector<8x128xf32>
    %cst_43 = arith.constant 1.000000e+00 : f32
    %182 = vector.broadcast %cst_43 : f32 to vector<8x128xf32>
    %183 = arith.addf %182, %181 : vector<8x128xf32>
    %184 = arith.divf %182, %183 : vector<8x128xf32>
    %185 = vector.extract_strided_slice %175 {offsets = [0, 128], sizes = [8, 128], strides = [1, 1]} : vector<8x384xf32> to vector<8x128xf32>
    %186 = vector.extract_strided_slice %176 {offsets = [0, 128], sizes = [8, 128], strides = [1, 1]} : vector<8x384xf32> to vector<8x128xf32>
    %187 = arith.addf %185, %186 : vector<8x128xf32>
    %188 = arith.negf %187 : vector<8x128xf32>
    %189 = math.exp %188 : vector<8x128xf32>
    %cst_44 = arith.constant 1.000000e+00 : f32
    %190 = vector.broadcast %cst_44 : f32 to vector<8x128xf32>
    %191 = arith.addf %190, %189 : vector<8x128xf32>
    %192 = arith.divf %190, %191 : vector<8x128xf32>
    %193 = vector.extract_strided_slice %175 {offsets = [0, 256], sizes = [8, 128], strides = [1, 1]} : vector<8x384xf32> to vector<8x128xf32>
    %194 = vector.extract_strided_slice %176 {offsets = [0, 256], sizes = [8, 128], strides = [1, 1]} : vector<8x384xf32> to vector<8x128xf32>
    %195 = arith.addf %194, %10 : vector<8x128xf32>
    %196 = arith.mulf %184, %195 : vector<8x128xf32>
    %197 = arith.addf %193, %196 : vector<8x128xf32>
    %198 = math.tanh %197 : vector<8x128xf32>
    %cst_45 = arith.constant 1.000000e+00 : f32
    %199 = vector.broadcast %cst_45 : f32 to vector<8x128xf32>
    %200 = arith.subf %199, %192 : vector<8x128xf32>
    %201 = arith.mulf %200, %198 : vector<8x128xf32>
    %202 = arith.mulf %192, %171 : vector<8x128xf32>
    %203 = arith.addf %201, %202 : vector<8x128xf32>
    %c5_i32 = arith.constant 5 : i32
    %204 = vector.broadcast %c5_i32 : i32 to vector<8x128xi32>
    %205 = arith.cmpi eq, %13, %204 : vector<8x128xi32>
    %206 = arith.select %205, %203, %174 : vector<8x128xi1>, vector<8x128xf32>
    %c48 = arith.constant 48 : index
    %c0_46 = arith.constant 0 : index
    %207 = vector.load %arg12[%c48, %c0_46] : memref<64x384xf32, #tpu.memory_space<vmem>>, vector<8x384xf32>
    %cst_47 = arith.constant dense<0.000000e+00> : vector<8x384xf32>
    %208 = tpu.matmul %203, %7, %cst_47 {dimension_numbers = #tpu.dot_dimension_numbers<[1], [0], [0], [1], [0, 0, 1, 1], [], []>} : vector<8x128xf32>, vector<128x384xf32>, vector<8x384xf32> -> vector<8x384xf32>
    %209 = vector.extract_strided_slice %207 {offsets = [0, 0], sizes = [8, 128], strides = [1, 1]} : vector<8x384xf32> to vector<8x128xf32>
    %210 = vector.extract_strided_slice %208 {offsets = [0, 0], sizes = [8, 128], strides = [1, 1]} : vector<8x384xf32> to vector<8x128xf32>
    %211 = arith.addf %209, %210 : vector<8x128xf32>
    %212 = arith.negf %211 : vector<8x128xf32>
    %213 = math.exp %212 : vector<8x128xf32>
    %cst_48 = arith.constant 1.000000e+00 : f32
    %214 = vector.broadcast %cst_48 : f32 to vector<8x128xf32>
    %215 = arith.addf %214, %213 : vector<8x128xf32>
    %216 = arith.divf %214, %215 : vector<8x128xf32>
    %217 = vector.extract_strided_slice %207 {offsets = [0, 128], sizes = [8, 128], strides = [1, 1]} : vector<8x384xf32> to vector<8x128xf32>
    %218 = vector.extract_strided_slice %208 {offsets = [0, 128], sizes = [8, 128], strides = [1, 1]} : vector<8x384xf32> to vector<8x128xf32>
    %219 = arith.addf %217, %218 : vector<8x128xf32>
    %220 = arith.negf %219 : vector<8x128xf32>
    %221 = math.exp %220 : vector<8x128xf32>
    %cst_49 = arith.constant 1.000000e+00 : f32
    %222 = vector.broadcast %cst_49 : f32 to vector<8x128xf32>
    %223 = arith.addf %222, %221 : vector<8x128xf32>
    %224 = arith.divf %222, %223 : vector<8x128xf32>
    %225 = vector.extract_strided_slice %207 {offsets = [0, 256], sizes = [8, 128], strides = [1, 1]} : vector<8x384xf32> to vector<8x128xf32>
    %226 = vector.extract_strided_slice %208 {offsets = [0, 256], sizes = [8, 128], strides = [1, 1]} : vector<8x384xf32> to vector<8x128xf32>
    %227 = arith.addf %226, %10 : vector<8x128xf32>
    %228 = arith.mulf %216, %227 : vector<8x128xf32>
    %229 = arith.addf %225, %228 : vector<8x128xf32>
    %230 = math.tanh %229 : vector<8x128xf32>
    %cst_50 = arith.constant 1.000000e+00 : f32
    %231 = vector.broadcast %cst_50 : f32 to vector<8x128xf32>
    %232 = arith.subf %231, %224 : vector<8x128xf32>
    %233 = arith.mulf %232, %230 : vector<8x128xf32>
    %234 = arith.mulf %224, %203 : vector<8x128xf32>
    %235 = arith.addf %233, %234 : vector<8x128xf32>
    %c6_i32 = arith.constant 6 : i32
    %236 = vector.broadcast %c6_i32 : i32 to vector<8x128xi32>
    %237 = arith.cmpi eq, %13, %236 : vector<8x128xi32>
    %238 = arith.select %237, %235, %206 : vector<8x128xi1>, vector<8x128xf32>
    %c56 = arith.constant 56 : index
    %c0_51 = arith.constant 0 : index
    %239 = vector.load %arg12[%c56, %c0_51] : memref<64x384xf32, #tpu.memory_space<vmem>>, vector<8x384xf32>
    %cst_52 = arith.constant dense<0.000000e+00> : vector<8x384xf32>
    %240 = tpu.matmul %235, %7, %cst_52 {dimension_numbers = #tpu.dot_dimension_numbers<[1], [0], [0], [1], [0, 0, 1, 1], [], []>} : vector<8x128xf32>, vector<128x384xf32>, vector<8x384xf32> -> vector<8x384xf32>
    %241 = vector.extract_strided_slice %239 {offsets = [0, 0], sizes = [8, 128], strides = [1, 1]} : vector<8x384xf32> to vector<8x128xf32>
    %242 = vector.extract_strided_slice %240 {offsets = [0, 0], sizes = [8, 128], strides = [1, 1]} : vector<8x384xf32> to vector<8x128xf32>
    %243 = arith.addf %241, %242 : vector<8x128xf32>
    %244 = arith.negf %243 : vector<8x128xf32>
    %245 = math.exp %244 : vector<8x128xf32>
    %cst_53 = arith.constant 1.000000e+00 : f32
    %246 = vector.broadcast %cst_53 : f32 to vector<8x128xf32>
    %247 = arith.addf %246, %245 : vector<8x128xf32>
    %248 = arith.divf %246, %247 : vector<8x128xf32>
    %249 = vector.extract_strided_slice %239 {offsets = [0, 128], sizes = [8, 128], strides = [1, 1]} : vector<8x384xf32> to vector<8x128xf32>
    %250 = vector.extract_strided_slice %240 {offsets = [0, 128], sizes = [8, 128], strides = [1, 1]} : vector<8x384xf32> to vector<8x128xf32>
    %251 = arith.addf %249, %250 : vector<8x128xf32>
    %252 = arith.negf %251 : vector<8x128xf32>
    %253 = math.exp %252 : vector<8x128xf32>
    %cst_54 = arith.constant 1.000000e+00 : f32
    %254 = vector.broadcast %cst_54 : f32 to vector<8x128xf32>
    %255 = arith.addf %254, %253 : vector<8x128xf32>
    %256 = arith.divf %254, %255 : vector<8x128xf32>
    %257 = vector.extract_strided_slice %239 {offsets = [0, 256], sizes = [8, 128], strides = [1, 1]} : vector<8x384xf32> to vector<8x128xf32>
    %258 = vector.extract_strided_slice %240 {offsets = [0, 256], sizes = [8, 128], strides = [1, 1]} : vector<8x384xf32> to vector<8x128xf32>
    %259 = arith.addf %258, %10 : vector<8x128xf32>
    %260 = arith.mulf %248, %259 : vector<8x128xf32>
    %261 = arith.addf %257, %260 : vector<8x128xf32>
    %262 = math.tanh %261 : vector<8x128xf32>
    %cst_55 = arith.constant 1.000000e+00 : f32
    %263 = vector.broadcast %cst_55 : f32 to vector<8x128xf32>
    %264 = arith.subf %263, %256 : vector<8x128xf32>
    %265 = arith.mulf %264, %262 : vector<8x128xf32>
    %266 = arith.mulf %256, %235 : vector<8x128xf32>
    %267 = arith.addf %265, %266 : vector<8x128xf32>
    %c7_i32 = arith.constant 7 : i32
    %268 = vector.broadcast %c7_i32 : i32 to vector<8x128xi32>
    %269 = arith.cmpi eq, %13, %268 : vector<8x128xi32>
    %270 = arith.select %269, %267, %238 : vector<8x128xi1>, vector<8x128xf32>
    %c0_56 = arith.constant 0 : index
    %c0_57 = arith.constant 0 : index
    %271 = vector.load %arg8[%c0_56, %c0_57] : memref<128x128xf32, #tpu.memory_space<vmem>>, vector<128x128xf32>
    %cst_58 = arith.constant dense<0.000000e+00> : vector<8x128xf32>
    %272 = tpu.matmul %270, %271, %cst_58 {dimension_numbers = #tpu.dot_dimension_numbers<[1], [0], [0], [1], [0, 0, 1, 1], [], []>} : vector<8x128xf32>, vector<128x128xf32>, vector<8x128xf32> -> vector<8x128xf32>
    %c0_59 = arith.constant 0 : index
    %c0_60 = arith.constant 0 : index
    %273 = vector.load %arg9[%c0_59, %c0_60] : memref<1x128xf32, #tpu.memory_space<vmem>>, vector<1x128xf32>
    %274 = vector.broadcast %273 : vector<1x128xf32> to vector<8x128xf32>
    %275 = arith.addf %272, %274 : vector<8x128xf32>
    %276 = arith.negf %275 : vector<8x128xf32>
    %277 = math.exp %276 : vector<8x128xf32>
    %cst_61 = arith.constant 1.000000e+00 : f32
    %278 = vector.broadcast %cst_61 : f32 to vector<8x128xf32>
    %279 = arith.addf %278, %277 : vector<8x128xf32>
    %280 = arith.divf %278, %279 : vector<8x128xf32>
    %c0_62 = arith.constant 0 : index
    %c0_63 = arith.constant 0 : index
    %281 = vector.load %arg10[%c0_62, %c0_63] : memref<8x128xf32, #tpu.memory_space<vmem>>, vector<8x128xf32>
    tpu.vector_store %arg10[%c0_62, %c0_63], %280 {strides = array<i32>} : memref<8x128xf32, #tpu.memory_space<vmem>>, vector<8x128xf32>,
    %c0_64 = arith.constant 0 : index
    %c0_65 = arith.constant 0 : index
    %282 = vector.load %arg11[%c0_64, %c0_65] : memref<8x128xf32, #tpu.memory_space<vmem>>, vector<8x128xf32>
    tpu.vector_store %arg11[%c0_64, %c0_65], %267 {strides = array<i32>} : memref<8x128xf32, #tpu.memory_space<vmem>>, vector<8x128xf32>,
    return
  }
  func.func @transform_0(%arg0: i32) -> (i32, i32) {
    %c0_i32 = arith.constant 0 : i32
    %c0_i32_0 = arith.constant 0 : i32
    %c0_i32_1 = arith.constant 0 : i32
    return %c0_i32, %c0_i32_0 : i32, i32
  }
  func.func @transform_1(%arg0: i32) -> (i32, i32) {
    %c0_i32 = arith.constant 0 : i32
    %c0_i32_0 = arith.constant 0 : i32
    %c0_i32_1 = arith.constant 0 : i32
    return %c0_i32, %c0_i32_0 : i32, i32
  }
  func.func @transform_2(%arg0: i32) -> (i32, i32) {
    %c0_i32 = arith.constant 0 : i32
    %c0_i32_0 = arith.constant 0 : i32
    %c0_i32_1 = arith.constant 0 : i32
    return %c0_i32, %c0_i32_0 : i32, i32
  }
  func.func @transform_3(%arg0: i32) -> (i32, i32) {
    %c0_i32 = arith.constant 0 : i32
    %c0_i32_0 = arith.constant 0 : i32
    %c0_i32_1 = arith.constant 0 : i32
    return %c0_i32, %c0_i32_0 : i32, i32
  }
  func.func @transform_4(%arg0: i32) -> (i32, i32) {
    %c0_i32 = arith.constant 0 : i32
    %c0_i32_0 = arith.constant 0 : i32
    %c0_i32_1 = arith.constant 0 : i32
    return %c0_i32, %c0_i32_0 : i32, i32
  }
  func.func @transform_5(%arg0: i32) -> (i32, i32) {
    %c0_i32 = arith.constant 0 : i32
    %c0_i32_0 = arith.constant 0 : i32
    %c0_i32_1 = arith.constant 0 : i32
    return %c0_i32, %c0_i32_0 : i32, i32
  }
  func.func @transform_6(%arg0: i32) -> (i32, i32) {
    %c0_i32 = arith.constant 0 : i32
    %c0_i32_0 = arith.constant 0 : i32
    %c0_i32_1 = arith.constant 0 : i32
    return %c0_i32, %c0_i32_0 : i32, i32
  }
  func.func @transform_7(%arg0: i32) -> (i32, i32) {
    %c0_i32 = arith.constant 0 : i32
    %c0_i32_0 = arith.constant 0 : i32
    %c0_i32_1 = arith.constant 0 : i32
    return %c0_i32, %c0_i32_0 : i32, i32
  }
  func.func @transform_8(%arg0: i32) -> (i32, i32) {
    %c0_i32 = arith.constant 0 : i32
    %c0_i32_0 = arith.constant 0 : i32
    %c0_i32_1 = arith.constant 0 : i32
    return %c0_i32, %c0_i32_0 : i32, i32
  }
  func.func @transform_9(%arg0: i32) -> (i32, i32) {
    %c0_i32 = arith.constant 0 : i32
    %c0_i32_0 = arith.constant 0 : i32
    %c0_i32_1 = arith.constant 0 : i32
    return %c0_i32, %c0_i32_0 : i32, i32
  }
  func.func @transform_10(%arg0: i32) -> (i32, i32) {
    %c0_i32 = arith.constant 0 : i32
    %c0_i32_0 = arith.constant 0 : i32
    %c0_i32_1 = arith.constant 0 : i32
    return %c0_i32, %c0_i32_0 : i32, i32
  }
}

</mosaic_0001>

<llo_original>
// kernel: tpu_custom_call.1
$region0: #{tpu_custom_call.1}
  #allocation0 [shape = 'u32[]', space=smem, size = 0x4, offset = 0x4, fixed_abs, tag = 'smem constant byte address 0x4 - core index']
  #allocation1 [shape = 'u32[144,128]{1,0:T(1,128)}', space=vmem, size = 0x12000, scoped, tag = 'internal scratch']
  #allocation2 [shape = 'f32[64,384]{1,0:T(8,128)}', space=vmem, size = 0x18000, scoped, tag = 'scratch operand']
  %s0 = inlined_call_operand.vmem [shape: f32[64,16], index: 0, kind: input, shape index: {}]
  %s1 = inlined_call_operand.vmem [shape: f32[8,128], index: 1, kind: input, shape index: {}]
  %s2 = inlined_call_operand.vmem [shape: s32[8,1], index: 2, kind: input, shape index: {}]
  %s3 = inlined_call_operand.vmem [shape: f32[16,384], index: 3, kind: input, shape index: {}]
  %s4 = inlined_call_operand.hbm [shape: f32[128,384], index: 4, kind: input, shape index: {}]
  %s5 = inlined_call_operand.vmem [shape: f32[1,384], index: 5, kind: input, shape index: {}]
  %s6 = inlined_call_operand.vmem [shape: f32[1,128], index: 6, kind: input, shape index: {}]
  %s7 = inlined_call_operand.hbm [shape: f32[128,128], index: 7, kind: input, shape index: {}]
  %s8 = inlined_call_operand.vmem [shape: f32[1,128], index: 8, kind: input, shape index: {}]
  %s9 = inlined_call_operand.hbm [shape: f32[8,128], index: 9, kind: output, shape index: {0}]
  %s10 = inlined_call_operand.hbm [shape: f32[8,128], index: 10, kind: output, shape index: {1}]
  %11 = xla_tuple %s9, %s10
  %s12 = sld [smem:[#allocation0]]
  $region62: #{tpu_custom_call.1} parent=0
    _
  %s14 = ssub.s32 1, %s12
  %s15 = scalar_select 0, %s14, %s12
  $region1: #{tpu_custom_call.1} parent=0
    #allocation3 [shape = 'u8[196608]{0}', space=vmem, size = 0x30000, scoped, tag = 'input window, operand 4, single buffered']
    #allocation4 [shape = 's32[1]{0}', space=sflag, size = 0x4, scoped, tag = 'scoped memory for tpu_custom_call.1']
    #allocation5 [shape = 's32[1]{0}', space=sflag, size = 0x4, scoped, tag = 'scoped memory for tpu_custom_call.1']
    #allocation6 [shape = 'u8[65536]{0}', space=vmem, size = 0x10000, scoped, tag = 'input window, operand 7, single buffered']
    #allocation7 [shape = 's32[1]{0}', space=sflag, size = 0x4, scoped, tag = 'scoped memory for tpu_custom_call.1']
    #allocation8 [shape = 'u8[4096]{0}', space=vmem, size = 0x1000, scoped, tag = 'output window, operand 0, single buffered']
    #allocation9 [shape = 'u8[4096]{0}', space=vmem, size = 0x1000, scoped, tag = 'output window, operand 1, single buffered']
    #allocation10 [shape = 's32[1]{0}', space=sflag, size = 0x4, scoped, tag = 'scoped memory for tpu_custom_call.1']
    %16 = vsyncpa [#allocation4], 0
    %17 = vsyncpa [#allocation7], 0
    %18 = vsyncpa [#allocation5], 0
    %19 = vsyncpa [#allocation10], 0
    // Predicated region
    $region2: #{tpu_custom_call.1} parent=1 // pred_check
      _
    $region3: #{tpu_custom_call.1} parent=1 // pred_check_branch
      %21 = sbr.rel (0) target = $region5
    $region4: #{tpu_custom_call.1} parent=1 // pred_region
      _
    $region5: #{tpu_custom_call.1} parent=1 // pred_fallthru
      _
    // Predicated region
    $region6: #{tpu_custom_call.1} parent=1 // pred_check
      _
    $region7: #{tpu_custom_call.1} parent=1 // pred_check_branch
      %23 = sbr.rel (0) target = $region9
    $region8: #{tpu_custom_call.1} parent=1 // pred_region
      _
    $region9: #{tpu_custom_call.1} parent=1 // pred_fallthru
      _
    // Predicated region
    $region10: #{tpu_custom_call.1} parent=1 // pred_check
      _
    $region11: #{tpu_custom_call.1} parent=1 // pred_check_branch
      %25 = sbr.rel (0) target = $region13
    $region12: #{tpu_custom_call.1} parent=1 // pred_region
      _
    $region13: #{tpu_custom_call.1} parent=1 // pred_fallthru
      _
    // Predicated region
    $region14: #{tpu_custom_call.1} parent=1 // pred_check
      _
    $region15: #{tpu_custom_call.1} parent=1 // pred_check_branch
      %27 = sbr.rel (0) target = $region17
    $region16: #{tpu_custom_call.1} parent=1 // pred_region
      _
    $region17: #{tpu_custom_call.1} parent=1 // pred_fallthru
      _
    // Predicated region
    $region18: #{tpu_custom_call.1} parent=1 // pred_check
      _
    $region19: #{tpu_custom_call.1} parent=1 // pred_check_branch
      %29 = sbr.rel (0) target = $region21
    $region20: #{tpu_custom_call.1} parent=1 // pred_region
      %s31 = ssub.s32 6144, 6144
      %32 = vsyncadd [#allocation4], %s31
      %s33 = sshll.u32 [#allocation3], 4
      %s34 = int_to_ptr.vmem [resolvable:$true] %s33
      %39 = dma.hbm_to_vmem [thread:$0]  %s4, 6144, %s34, [#allocation4], 384, 384, 24
    $region21: #{tpu_custom_call.1} parent=1 // pred_fallthru
      _
    // Predicated region
    $region22: #{tpu_custom_call.1} parent=1 // pred_check
      _
    $region23: #{tpu_custom_call.1} parent=1 // pred_check_branch
      %41 = sbr.rel (0) target = $region25
    $region24: #{tpu_custom_call.1} parent=1 // pred_region
      _
    $region25: #{tpu_custom_call.1} parent=1 // pred_fallthru
      _
    // Predicated region
    $region26: #{tpu_custom_call.1} parent=1 // pred_check
      _
    $region27: #{tpu_custom_call.1} parent=1 // pred_check_branch
      %43 = sbr.rel (0) target = $region29
    $region28: #{tpu_custom_call.1} parent=1 // pred_region
      _
    $region29: #{tpu_custom_call.1} parent=1 // pred_fallthru
      _
    // Predicated region
    $region30: #{tpu_custom_call.1} parent=1 // pred_check
      _
    $region31: #{tpu_custom_call.1} parent=1 // pred_check_branch
      %45 = sbr.rel (0) target = $region33
    $region32: #{tpu_custom_call.1} parent=1 // pred_region
      %s47 = ssub.s32 2048, 2048
      %48 = vsyncadd [#allocation7], %s47
      %s49 = sshll.u32 [#allocation6], 4
      %s50 = int_to_ptr.vmem [resolvable:$true] %s49
      %55 = dma.hbm_to_vmem [thread:$0]  %s7, 2048, %s50, [#allocation7], 128, 128, 8
    $region33: #{tpu_custom_call.1} parent=1 // pred_fallthru
      _
    // Predicated region
    $region34: #{tpu_custom_call.1} parent=1 // pred_check
      _
    $region35: #{tpu_custom_call.1} parent=1 // pred_check_branch
      %57 = sbr.rel (0) target = $region37
    $region36: #{tpu_custom_call.1} parent=1 // pred_region
      _
    $region37: #{tpu_custom_call.1} parent=1 // pred_fallthru
      _
    // Predicated region
    $region38: #{tpu_custom_call.1} parent=1 // pred_check
      _
    $region39: #{tpu_custom_call.1} parent=1 // pred_check_branch
      %59 = sbr.rel (0) target = $region41
    $region40: #{tpu_custom_call.1} parent=1 // pred_region
      %60 = dma.done [#allocation4], 6144
    $region41: #{tpu_custom_call.1} parent=1 // pred_fallthru
      _
    // Predicated region
    $region42: #{tpu_custom_call.1} parent=1 // pred_check
      _
    $region43: #{tpu_custom_call.1} parent=1 // pred_check_branch
      %62 = sbr.rel (0) target = $region45
    $region44: #{tpu_custom_call.1} parent=1 // pred_region
      %63 = dma.done [#allocation7], 2048
    $region45: #{tpu_custom_call.1} parent=1 // pred_fallthru
      _
    %v64 = vld [vmem:[%s0] sm:$0xff]
    %v65 = vld [vmem:[%s0 + $0x8] sm:$0xff]
    %v66 = vld [vmem:[%s0 + $0x10] sm:$0xff]
    %v67 = vld [vmem:[%s0 + $0x18] sm:$0xff]
    %v68 = vld [vmem:[%s0 + $0x20] sm:$0xff]
    %v69 = vld [vmem:[%s0 + $0x28] sm:$0xff]
    %v70 = vld [vmem:[%s0 + $0x30] sm:$0xff]
    %v71 = vld [vmem:[%s0 + $0x38] sm:$0xff]
    %v72 = vld [vmem:[%s3] sm:$0xff]
    %v73 = vld [vmem:[%s3 + $0x8] sm:$0xff]
    %v74 = vld [vmem:[%s3 + $0x10] sm:$0xff]
    %v75 = vld [vmem:[%s3 + $0x18] sm:$0xff]
    %v76 = vld [vmem:[%s3 + $0x20] sm:$0xff]
    %v77 = vld [vmem:[%s3 + $0x28] sm:$0xff]
    %v78 = vld [vmem:[%s5] sm:$0x7]
    %v80 = vlaneseq
    %v81 = vshrl.u32 %v80, 7
    %v82 = vsub.s32 0, %v81
    %v83 = vrot.slane %v78, %v82
    %v84 = vlaneseq
    %v85 = vshrl.u32 %v84, 7
    %v86 = vsub.s32 1, %v85
    %v87 = vrot.slane %v78, %v86
    %v88 = vlaneseq
    %v89 = vshrl.u32 %v88, 7
    %v90 = vsub.s32 2, %v89
    %v91 = vrot.slane %v78, %v90
    %vm95 = vcmask 130048
    %v97 = vsel %vm95, %v64, 0
    %v100 = vsel %vm95, %v65, 0
    %v103 = vsel %vm95, %v66, 0
    %v106 = vsel %vm95, %v67, 0
    %v109 = vsel %vm95, %v68, 0
    %v112 = vsel %vm95, %v69, 0
    %v115 = vsel %vm95, %v70, 0
    %v118 = vsel %vm95, %v71, 0
    %120 = vmatprep.subr.mxu0 %v73
    %121 = vmatpush1.msra.mxu0 %v72
    %122 = vmatprep.subr.mxu0 %v76
    %123 = vmatpush1.msra.mxu0 %v75
    %124 = vmatprep.subr.mxu0 0.0
    %125 = vmatpush1.msra.mxu0 0.0
    %126 = vmatprep.subr.mxu0 0.0
    %127 = vmatpush1.msra.mxu0 0.0
    %128 = vmatprep.subr.mxu0 0.0
    %129 = vmatpush1.msra.mxu0 0.0
    %130 = vmatprep.subr.mxu0 0.0
    %131 = vmatpush1.msra.mxu0 0.0
    %132 = vmatprep.subr.mxu0 0.0
    %133 = vmatpush1.msra.mxu0 0.0
    %134 = vmatprep.subr.mxu0 0.0
    %135 = vmatpush1.msra.mxu0 0.0
    %136 = vmatprep.subr.mxu0 0.0
    %137 = vmatpush1.msra.mxu0 0.0
    %138 = vmatprep.subr.mxu0 0.0
    %139 = vmatpush1.msra.mxu0 0.0
    %140 = vmatprep.subr.mxu0 0.0
    %141 = vmatpush1.msra.mxu0 0.0
    %142 = vmatprep.subr.mxu0 0.0
    %143 = vmatpush1.msra.mxu0 0.0
    %144 = vmatprep.subr.mxu0 0.0
    %145 = vmatpush1.msra.mxu0 0.0
    %146 = vmatprep.subr.mxu0 0.0
    %147 = vmatpush1.msra.mxu0 0.0
    %148 = vmatprep.subr.mxu0 0.0
    %149 = vmatpush1.msra.mxu0 0.0
    %150 = vmatprep.subr.mxu0 0.0
    %151 = vmatpush1.msra.mxu0 0.0
    %152 = vmatprep.subr.mxu0 0.0
    %153 = vmatpush1.msra.mxu0 0.0
    %154 = vmatprep.subr.mxu0 0.0
    %155 = vmatpush1.msra.mxu0 0.0
    %156 = vmatprep.subr.mxu0 0.0
    %157 = vmatpush1.msra.mxu0 0.0
    %158 = vmatprep.subr.mxu0 0.0
    %159 = vmatpush1.msra.mxu0 0.0
    %160 = vmatprep.subr.mxu0 0.0
    %161 = vmatpush1.msra.mxu0 0.0
    %162 = vmatprep.subr.mxu0 0.0
    %163 = vmatpush1.msra.mxu0 0.0
    %164 = vmatprep.subr.mxu0 0.0
    %165 = vmatpush1.msra.mxu0 0.0
    %166 = vmatprep.subr.mxu0 0.0
    %167 = vmatpush1.msra.mxu0 0.0
    %168 = vmatprep.subr.mxu0 0.0
    %169 = vmatpush1.msra.mxu0 0.0
    %170 = vmatprep.subr.mxu0 0.0
    %171 = vmatpush1.msra.mxu0 0.0
    %172 = vmatprep.subr.mxu0 0.0
    %173 = vmatpush1.msra.mxu0 0.0
    %174 = vmatprep.subr.mxu0 0.0
    %175 = vmatpush1.msra.mxu0 0.0
    %176 = vmatprep.subr.mxu0 0.0
    %177 = vmatpush1.msra.mxu0 0.0
    %178 = vmatprep.subr.mxu0 0.0
    %179 = vmatpush1.msra.mxu0 0.0
    %180 = vmatprep.subr.mxu0 0.0
    %181 = vmatpush1.msra.mxu0 0.0
    %182 = vmatprep.subr.mxu0 0.0
    %183 = vmatpush1.msra.mxu0 0.0
    %184 = vmatprep.mubr.f32.mxu0 0.0
    %185 = vmatmul.mubr.f32.gmra.mrb[0].mxu0 %v97
    %v186 = vpop.f32.mrb[0].mxu0
    %v187 = vadd.f32 %v83, %v186
    %v188 = vpop.f32.mrb[0].mxu0
    %v189 = vadd.f32 %v87, %v188
    %190 = vmatprep.mubr.f32.mxu0 0.0
    %191 = vmatmul.mubr.f32.gmra.mrb[0].mxu0 %v100
    %v192 = vpop.f32.mrb[0].mxu0
    %v193 = vadd.f32 %v83, %v192
    %v194 = vpop.f32.mrb[0].mxu0
    %v195 = vadd.f32 %v87, %v194
    %196 = vmatprep.mubr.f32.mxu0 0.0
    %197 = vmatmul.mubr.f32.gmra.mrb[0].mxu0 %v103
    %v198 = vpop.f32.mrb[0].mxu0
    %v199 = vadd.f32 %v83, %v198
    %v200 = vpop.f32.mrb[0].mxu0
    %v201 = vadd.f32 %v87, %v200
    %202 = vmatprep.mubr.f32.mxu0 0.0
    %203 = vmatmul.mubr.f32.gmra.mrb[0].mxu0 %v106
    %v204 = vpop.f32.mrb[0].mxu0
    %v205 = vadd.f32 %v83, %v204
    %v206 = vpop.f32.mrb[0].mxu0
    %v207 = vadd.f32 %v87, %v206
    %208 = vmatprep.mubr.f32.mxu0 0.0
    %209 = vmatmul.mubr.f32.gmra.mrb[0].mxu0 %v109
    %v210 = vpop.f32.mrb[0].mxu0
    %v211 = vadd.f32 %v83, %v210
    %v212 = vpop.f32.mrb[0].mxu0
    %v213 = vadd.f32 %v87, %v212
    %214 = vmatprep.mubr.f32.mxu0 0.0
    %215 = vmatmul.mubr.f32.gmra.mrb[0].mxu0 %v112
    %v216 = vpop.f32.mrb[0].mxu0
    %v217 = vadd.f32 %v83, %v216
    %v218 = vpop.f32.mrb[0].mxu0
    %v219 = vadd.f32 %v87, %v218
    %220 = vmatprep.mubr.f32.mxu0 0.0
    %221 = vmatmul.mubr.f32.gmra.mrb[0].mxu0 %v115
    %v222 = vpop.f32.mrb[0].mxu0
    %v223 = vadd.f32 %v83, %v222
    %v224 = vpop.f32.mrb[0].mxu0
    %v225 = vadd.f32 %v87, %v224
    %226 = vmatprep.mubr.f32.mxu0 0.0
    %227 = vmatmul.mubr.f32.gmra.mrb[0].mxu0 %v118
    %v228 = vpop.f32.mrb[0].mxu0
    %v229 = vadd.f32 %v83, %v228
    %v230 = vpop.f32.mrb[0].mxu0
    %v231 = vadd.f32 %v87, %v230
    %232 = vdwg.mxu0
    %233 = vmatprep.subr.mxu0 0.0
    %234 = vmatpush1.msra.mxu0 %v74
    %235 = vmatprep.subr.mxu0 0.0
    %236 = vmatpush1.msra.mxu0 %v77
    %237 = vmatprep.subr.mxu0 0.0
    %238 = vmatpush1.msra.mxu0 0.0
    %239 = vmatprep.subr.mxu0 0.0
    %240 = vmatpush1.msra.mxu0 0.0
    %241 = vmatprep.subr.mxu0 0.0
    %242 = vmatpush1.msra.mxu0 0.0
    %243 = vmatprep.subr.mxu0 0.0
    %244 = vmatpush1.msra.mxu0 0.0
    %245 = vmatprep.subr.mxu0 0.0
    %246 = vmatpush1.msra.mxu0 0.0
    %247 = vmatprep.subr.mxu0 0.0
    %248 = vmatpush1.msra.mxu0 0.0
    %249 = vmatprep.subr.mxu0 0.0
    %250 = vmatpush1.msra.mxu0 0.0
    %251 = vmatprep.subr.mxu0 0.0
    %252 = vmatpush1.msra.mxu0 0.0
    %253 = vmatprep.subr.mxu0 0.0
    %254 = vmatpush1.msra.mxu0 0.0
    %255 = vmatprep.subr.mxu0 0.0
    %256 = vmatpush1.msra.mxu0 0.0
    %257 = vmatprep.subr.mxu0 0.0
    %258 = vmatpush1.msra.mxu0 0.0
    %259 = vmatprep.subr.mxu0 0.0
    %260 = vmatpush1.msra.mxu0 0.0
    %261 = vmatprep.subr.mxu0 0.0
    %262 = vmatpush1.msra.mxu0 0.0
    %263 = vmatprep.subr.mxu0 0.0
    %264 = vmatpush1.msra.mxu0 0.0
    %265 = vmatprep.subr.mxu0 0.0
    %266 = vmatpush1.msra.mxu0 0.0
    %267 = vmatprep.subr.mxu0 0.0
    %268 = vmatpush1.msra.mxu0 0.0
    %269 = vmatprep.subr.mxu0 0.0
    %270 = vmatpush1.msra.mxu0 0.0
    %271 = vmatprep.subr.mxu0 0.0
    %272 = vmatpush1.msra.mxu0 0.0
    %273 = vmatprep.subr.mxu0 0.0
    %274 = vmatpush1.msra.mxu0 0.0
    %275 = vmatprep.subr.mxu0 0.0
    %276 = vmatpush1.msra.mxu0 0.0
    %277 = vmatprep.subr.mxu0 0.0
    %278 = vmatpush1.msra.mxu0 0.0
    %279 = vmatprep.subr.mxu0 0.0
    %280 = vmatpush1.msra.mxu0 0.0
    %281 = vmatprep.subr.mxu0 0.0
    %282 = vmatpush1.msra.mxu0 0.0
    %283 = vmatprep.subr.mxu0 0.0
    %284 = vmatpush1.msra.mxu0 0.0
    %285 = vmatprep.subr.mxu0 0.0
    %286 = vmatpush1.msra.mxu0 0.0
    %287 = vmatprep.subr.mxu0 0.0
    %288 = vmatpush1.msra.mxu0 0.0
    %289 = vmatprep.subr.mxu0 0.0
    %290 = vmatpush1.msra.mxu0 0.0
    %291 = vmatprep.subr.mxu0 0.0
    %292 = vmatpush1.msra.mxu0 0.0
    %293 = vmatprep.subr.mxu0 0.0
    %294 = vmatpush1.msra.mxu0 0.0
    %295 = vmatprep.subr.mxu0 0.0
    %296 = vmatpush1.msra.mxu0 0.0
    %297 = vmatprep.mubr.f32.mxu0 0.0
    %298 = vmatmul.mubr.f32.gmra.mrb[0].mxu0 %v97
    %v299 = vpop.f32.mrb[0].mxu0
    %v300 = vadd.f32 %v91, %v299
    %v301 = vpop.f32.mrb[0].mxu0
    %302 = vmatprep.mubr.f32.mxu0 0.0
    %303 = vmatmul.mubr.f32.gmra.mrb[0].mxu0 %v100
    %v304 = vpop.f32.mrb[0].mxu0
    %v305 = vadd.f32 %v91, %v304
    %v306 = vpop.f32.mrb[0].mxu0
    %307 = vmatprep.mubr.f32.mxu0 0.0
    %308 = vmatmul.mubr.f32.gmra.mrb[0].mxu0 %v103
    %v309 = vpop.f32.mrb[0].mxu0
    %v310 = vadd.f32 %v91, %v309
    %v311 = vpop.f32.mrb[0].mxu0
    %312 = vmatprep.mubr.f32.mxu0 0.0
    %313 = vmatmul.mubr.f32.gmra.mrb[0].mxu0 %v106
    %v314 = vpop.f32.mrb[0].mxu0
    %v315 = vadd.f32 %v91, %v314
    %v316 = vpop.f32.mrb[0].mxu0
    %317 = vmatprep.mubr.f32.mxu0 0.0
    %318 = vmatmul.mubr.f32.gmra.mrb[0].mxu0 %v109
    %v319 = vpop.f32.mrb[0].mxu0
    %v320 = vadd.f32 %v91, %v319
    %v321 = vpop.f32.mrb[0].mxu0
    %322 = vmatprep.mubr.f32.mxu0 0.0
    %323 = vmatmul.mubr.f32.gmra.mrb[0].mxu0 %v112
    %v324 = vpop.f32.mrb[0].mxu0
    %v325 = vadd.f32 %v91, %v324
    %v326 = vpop.f32.mrb[0].mxu0
    %327 = vmatprep.mubr.f32.mxu0 0.0
    %328 = vmatmul.mubr.f32.gmra.mrb[0].mxu0 %v115
    %v329 = vpop.f32.mrb[0].mxu0
    %v330 = vadd.f32 %v91, %v329
    %v331 = vpop.f32.mrb[0].mxu0
    %332 = vmatprep.mubr.f32.mxu0 0.0
    %333 = vmatmul.mubr.f32.gmra.mrb[0].mxu0 %v118
    %v334 = vpop.f32.mrb[0].mxu0
    %v335 = vadd.f32 %v91, %v334
    %v336 = vpop.f32.mrb[0].mxu0
    %337 = vdwg.mxu0
    %338 = vst [vmem:[#allocation2] sm:$0xff] %v187
    %339 = vst [vmem:[#allocation2 + $0x8] sm:$0xff] %v189
    %340 = vst [vmem:[#allocation2 + $0x10] sm:$0xff] %v300
    %341 = vst [vmem:[#allocation2 + $0x18] sm:$0xff] %v193
    %342 = vst [vmem:[#allocation2 + $0x20] sm:$0xff] %v195
    %343 = vst [vmem:[#allocation2 + $0x28] sm:$0xff] %v305
    %344 = vst [vmem:[#allocation2 + $0x30] sm:$0xff] %v199
    %345 = vst [vmem:[#allocation2 + $0x38] sm:$0xff] %v201
    %346 = vst [vmem:[#allocation2 + $0x40] sm:$0xff] %v310
    %347 = vst [vmem:[#allocation2 + $0x48] sm:$0xff] %v205
    %348 = vst [vmem:[#allocation2 + $0x50] sm:$0xff] %v207
    %349 = vst [vmem:[#allocation2 + $0x58] sm:$0xff] %v315
    %350 = vst [vmem:[#allocation2 + $0x60] sm:$0xff] %v211
    %351 = vst [vmem:[#allocation2 + $0x68] sm:$0xff] %v213
    %352 = vst [vmem:[#allocation2 + $0x70] sm:$0xff] %v320
    %353 = vst [vmem:[#allocation2 + $0x78] sm:$0xff] %v217
    %354 = vst [vmem:[#allocation2 + $0x80] sm:$0xff] %v219
    %355 = vst [vmem:[#allocation2 + $0x88] sm:$0xff] %v325
    %356 = vst [vmem:[#allocation2 + $0x90] sm:$0xff] %v223
    %357 = vst [vmem:[#allocation2 + $0x98] sm:$0xff] %v225
    %358 = vst [vmem:[#allocation2 + $0xa0] sm:$0xff] %v330
    %359 = vst [vmem:[#allocation2 + $0xa8] sm:$0xff] %v229
    %360 = vst [vmem:[#allocation2 + $0xb0] sm:$0xff] %v231
    %361 = vst [vmem:[#allocation2 + $0xb8] sm:$0xff] %v335
    %v362 = vld [vmem:[#allocation3] sm:$0xff]
    %v363 = vld [vmem:[#allocation3 + $0x8] sm:$0xff]
    %v364 = vld [vmem:[#allocation3 + $0x10] sm:$0xff]
    %v365 = vld [vmem:[#allocation3 + $0x18] sm:$0xff]
    %v366 = vld [vmem:[#allocation3 + $0x20] sm:$0xff]
    %v367 = vld [vmem:[#allocation3 + $0x28] sm:$0xff]
    %v368 = vld [vmem:[#allocation3 + $0x30] sm:$0xff]
    %v369 = vld [vmem:[#allocation3 + $0x38] sm:$0xff]
    %v370 = vld [vmem:[#allocation3 + $0x40] sm:$0xff]
    %v371 = vld [vmem:[#allocation3 + $0x48] sm:$0xff]
    %v372 = vld [vmem:[#allocation3 + $0x50] sm:$0xff]
    %v373 = vld [vmem:[#allocation3 + $0x58] sm:$0xff]
    %v374 = vld [vmem:[#allocation3 + $0x60] sm:$0xff]
    %v375 = vld [vmem:[#allocation3 + $0x68] sm:$0xff]
    %v376 = vld [vmem:[#allocation3 + $0x70] sm:$0xff]
    %v377 = vld [vmem:[#allocation3 + $0x78] sm:$0xff]
    %v378 = vld [vmem:[#allocation3 + $0x80] sm:$0xff]
    %v379 = vld [vmem:[#allocation3 + $0x88] sm:$0xff]
    %v380 = vld [vmem:[#allocation3 + $0x90] sm:$0xff]
    %v381 = vld [vmem:[#allocation3 + $0x98] sm:$0xff]
    %v382 = vld [vmem:[#allocation3 + $0xa0] sm:$0xff]
    %v383 = vld [vmem:[#allocation3 + $0xa8] sm:$0xff]
    %v384 = vld [vmem:[#allocation3 + $0xb0] sm:$0xff]
    %v385 = vld [vmem:[#allocation3 + $0xb8] sm:$0xff]
    %v386 = vld [vmem:[#allocation3 + $0xc0] sm:$0xff]
    %v387 = vld [vmem:[#allocation3 + $0xc8] sm:$0xff]
    %v388 = vld [vmem:[#allocation3 + $0xd0] sm:$0xff]
    %v389 = vld [vmem:[#allocation3 + $0xd8] sm:$0xff]
    %v390 = vld [vmem:[#allocation3 + $0xe0] sm:$0xff]
    %v391 = vld [vmem:[#allocation3 + $0xe8] sm:$0xff]
    %v392 = vld [vmem:[#allocation3 + $0xf0] sm:$0xff]
    %v393 = vld [vmem:[#allocation3 + $0xf8] sm:$0xff]
    %v394 = vld [vmem:[#allocation3 + $0x100] sm:$0xff]
    %v395 = vld [vmem:[#allocation3 + $0x108] sm:$0xff]
    %v396 = vld [vmem:[#allocation3 + $0x110] sm:$0xff]
    %v397 = vld [vmem:[#allocation3 + $0x118] sm:$0xff]
    %v398 = vld [vmem:[#allocation3 + $0x120] sm:$0xff]
    %v399 = vld [vmem:[#allocation3 + $0x128] sm:$0xff]
    %v400 = vld [vmem:[#allocation3 + $0x130] sm:$0xff]
    %v401 = vld [vmem:[#allocation3 + $0x138] sm:$0xff]
    %v402 = vld [vmem:[#allocation3 + $0x140] sm:$0xff]
    %v403 = vld [vmem:[#allocation3 + $0x148] sm:$0xff]
    %v404 = vld [vmem:[#allocation3 + $0x150] sm:$0xff]
    %v405 = vld [vmem:[#allocation3 + $0x158] sm:$0xff]
    %v406 = vld [vmem:[#allocation3 + $0x160] sm:$0xff]
    %v407 = vld [vmem:[#allocation3 + $0x168] sm:$0xff]
    %v408 = vld [vmem:[#allocation3 + $0x170] sm:$0xff]
    %v409 = vld [vmem:[#allocation3 + $0x178] sm:$0xff]
    %v410 = vld [vmem:[%s6] sm:$0x1]
    %v412 = vlaneseq
    %v413 = vshrl.u32 %v412, 7
    %v414 = vsub.s32 0, %v413
    %v415 = vrot.slane %v410, %v414
    %v417 = vld [vmem:[%s2] sm:$0xff]
    %418 = vset.pattern.permute.xlu0 0
    %419 = vperm.xlu0 %418, %v417
    %v420 = vpop.permute.xlu0 %419
    %v421 = vld [vmem:[%s1] sm:$0xff]
    %v422 = vld [vmem:[#allocation2] sm:$0xff]
    %v423 = vld [vmem:[#allocation2 + $0x8] sm:$0xff]
    %v424 = vld [vmem:[#allocation2 + $0x10] sm:$0xff]
    %425 = vmatprep.subr.mxu0 %v363
    %426 = vmatpush1.msra.mxu0 %v362
    %427 = vmatprep.subr.mxu0 %v366
    %428 = vmatpush1.msra.mxu0 %v365
    %429 = vmatprep.subr.mxu0 %v369
    %430 = vmatpush1.msra.mxu0 %v368
    %431 = vmatprep.subr.mxu0 %v372
    %432 = vmatpush1.msra.mxu0 %v371
    %433 = vmatprep.subr.mxu0 %v375
    %434 = vmatpush1.msra.mxu0 %v374
    %435 = vmatprep.subr.mxu0 %v378
    %436 = vmatpush1.msra.mxu0 %v377
    %437 = vmatprep.subr.mxu0 %v381
    %438 = vmatpush1.msra.mxu0 %v380
    %439 = vmatprep.subr.mxu0 %v384
    %440 = vmatpush1.msra.mxu0 %v383
    %441 = vmatprep.subr.mxu0 %v387
    %442 = vmatpush1.msra.mxu0 %v386
    %443 = vmatprep.subr.mxu0 %v390
    %444 = vmatpush1.msra.mxu0 %v389
    %445 = vmatprep.subr.mxu0 %v393
    %446 = vmatpush1.msra.mxu0 %v392
    %447 = vmatprep.subr.mxu0 %v396
    %448 = vmatpush1.msra.mxu0 %v395
    %449 = vmatprep.subr.mxu0 %v399
    %450 = vmatpush1.msra.mxu0 %v398
    %451 = vmatprep.subr.mxu0 %v402
    %452 = vmatpush1.msra.mxu0 %v401
    %453 = vmatprep.subr.mxu0 %v405
    %454 = vmatpush1.msra.mxu0 %v404
    %455 = vmatprep.subr.mxu0 %v408
    %456 = vmatpush1.msra.mxu0 %v407
    %457 = vmatprep.subr.mxu0 0.0
    %458 = vmatpush1.msra.mxu0 0.0
    %459 = vmatprep.subr.mxu0 0.0
    %460 = vmatpush1.msra.mxu0 0.0
    %461 = vmatprep.subr.mxu0 0.0
    %462 = vmatpush1.msra.mxu0 0.0
    %463 = vmatprep.subr.mxu0 0.0
    %464 = vmatpush1.msra.mxu0 0.0
    %465 = vmatprep.subr.mxu0 0.0
    %466 = vmatpush1.msra.mxu0 0.0
    %467 = vmatprep.subr.mxu0 0.0
    %468 = vmatpush1.msra.mxu0 0.0
    %469 = vmatprep.subr.mxu0 0.0
    %470 = vmatpush1.msra.mxu0 0.0
    %471 = vmatprep.subr.mxu0 0.0
    %472 = vmatpush1.msra.mxu0 0.0
    %473 = vmatprep.subr.mxu0 0.0
    %474 = vmatpush1.msra.mxu0 0.0
    %475 = vmatprep.subr.mxu0 0.0
    %476 = vmatpush1.msra.mxu0 0.0
    %477 = vmatprep.subr.mxu0 0.0
    %478 = vmatpush1.msra.mxu0 0.0
    %479 = vmatprep.subr.mxu0 0.0
    %480 = vmatpush1.msra.mxu0 0.0
    %481 = vmatprep.subr.mxu0 0.0
    %482 = vmatpush1.msra.mxu0 0.0
    %483 = vmatprep.subr.mxu0 0.0
    %484 = vmatpush1.msra.mxu0 0.0
    %485 = vmatprep.subr.mxu0 0.0
    %486 = vmatpush1.msra.mxu0 0.0
    %487 = vmatprep.subr.mxu0 0.0
    %488 = vmatpush1.msra.mxu0 0.0
    %489 = vmatprep.mubr.f32.mxu0 0.0
    %490 = vmatmul.mubr.f32.gmra.mrb[0].mxu0 %v421
    %v491 = vpop.f32.mrb[0].mxu0
    %v492 = vadd.f32 0.0, %v491
    %v493 = vpop.f32.mrb[0].mxu0
    %v494 = vadd.f32 0.0, %v493
    %495 = vdwg.mxu0
    %496 = vmatprep.subr.mxu0 0.0
    %497 = vmatpush1.msra.mxu0 %v364
    %498 = vmatprep.subr.mxu0 0.0
    %499 = vmatpush1.msra.mxu0 %v367
    %500 = vmatprep.subr.mxu0 0.0
    %501 = vmatpush1.msra.mxu0 %v370
    %502 = vmatprep.subr.mxu0 0.0
    %503 = vmatpush1.msra.mxu0 %v373
    %504 = vmatprep.subr.mxu0 0.0
    %505 = vmatpush1.msra.mxu0 %v376
    %506 = vmatprep.subr.mxu0 0.0
    %507 = vmatpush1.msra.mxu0 %v379
    %508 = vmatprep.subr.mxu0 0.0
    %509 = vmatpush1.msra.mxu0 %v382
    %510 = vmatprep.subr.mxu0 0.0
    %511 = vmatpush1.msra.mxu0 %v385
    %512 = vmatprep.subr.mxu0 0.0
    %513 = vmatpush1.msra.mxu0 %v388
    %514 = vmatprep.subr.mxu0 0.0
    %515 = vmatpush1.msra.mxu0 %v391
    %516 = vmatprep.subr.mxu0 0.0
    %517 = vmatpush1.msra.mxu0 %v394
    %518 = vmatprep.subr.mxu0 0.0
    %519 = vmatpush1.msra.mxu0 %v397
    %520 = vmatprep.subr.mxu0 0.0
    %521 = vmatpush1.msra.mxu0 %v400
    %522 = vmatprep.subr.mxu0 0.0
    %523 = vmatpush1.msra.mxu0 %v403
    %524 = vmatprep.subr.mxu0 0.0
    %525 = vmatpush1.msra.mxu0 %v406
    %526 = vmatprep.subr.mxu0 0.0
    %527 = vmatpush1.msra.mxu0 %v409
    %528 = vmatprep.subr.mxu0 0.0
    %529 = vmatpush1.msra.mxu0 0.0
    %530 = vmatprep.subr.mxu0 0.0
    %531 = vmatpush1.msra.mxu0 0.0
    %532 = vmatprep.subr.mxu0 0.0
    %533 = vmatpush1.msra.mxu0 0.0
    %534 = vmatprep.subr.mxu0 0.0
    %535 = vmatpush1.msra.mxu0 0.0
    %536 = vmatprep.subr.mxu0 0.0
    %537 = vmatpush1.msra.mxu0 0.0
    %538 = vmatprep.subr.mxu0 0.0
    %539 = vmatpush1.msra.mxu0 0.0
    %540 = vmatprep.subr.mxu0 0.0
    %541 = vmatpush1.msra.mxu0 0.0
    %542 = vmatprep.subr.mxu0 0.0
    %543 = vmatpush1.msra.mxu0 0.0
    %544 = vmatprep.subr.mxu0 0.0
    %545 = vmatpush1.msra.mxu0 0.0
    %546 = vmatprep.subr.mxu0 0.0
    %547 = vmatpush1.msra.mxu0 0.0
    %548 = vmatprep.subr.mxu0 0.0
    %549 = vmatpush1.msra.mxu0 0.0
    %550 = vmatprep.subr.mxu0 0.0
    %551 = vmatpush1.msra.mxu0 0.0
    %552 = vmatprep.subr.mxu0 0.0
    %553 = vmatpush1.msra.mxu0 0.0
    %554 = vmatprep.subr.mxu0 0.0
    %555 = vmatpush1.msra.mxu0 0.0
    %556 = vmatprep.subr.mxu0 0.0
    %557 = vmatpush1.msra.mxu0 0.0
    %558 = vmatprep.subr.mxu0 0.0
    %559 = vmatpush1.msra.mxu0 0.0
    %560 = vmatprep.mubr.f32.mxu0 0.0
    %561 = vmatmul.mubr.f32.gmra.mrb[0].mxu0 %v421
    %v562 = vpop.f32.mrb[0].mxu0
    %v563 = vadd.f32 0.0, %v562
    %v564 = vpop.f32.mrb[0].mxu0
    %565 = vdwg.mxu0
    %v566 = vadd.f32 %v422, %v492
    %v567 = vxor.u32 %v566, 2147483648
    %v568 = vmul.f32 %v567, 1.442695
    %v569 = vpow.pop %v568
    %v570 = vadd.f32 %v569, 1.0
    %v571 = vrcp.pop %v570
    %v572 = vmul.f32 1.0, %v571
    %v573 = vadd.f32 %v423, %v494
    %v574 = vxor.u32 %v573, 2147483648
    %v575 = vmul.f32 %v574, 1.442695
    %v576 = vpow.pop %v575
    %v577 = vadd.f32 %v576, 1.0
    %v578 = vrcp.pop %v577
    %v579 = vmul.f32 1.0, %v578
    %v580 = vadd.f32 %v563, %v415
    %v581 = vmul.f32 %v572, %v580
    %v582 = vadd.f32 %v424, %v581
    %v583 = vtanh.pop %v582
    %v584 = vsub.f32 1.0, %v579
    %v585 = vmul.f32 %v584, %v583
    %v586 = vmul.f32 %v579, %v421
    %v587 = vadd.f32 %v585, %v586
    %vm588 = vcmp.eq.s32.totalorder %v420, 0
    %v589 = vsel %vm588, %v587, %v421
    %v590 = vld [vmem:[#allocation2 + $0x18] sm:$0xff]
    %v591 = vld [vmem:[#allocation2 + $0x20] sm:$0xff]
    %v592 = vld [vmem:[#allocation2 + $0x28] sm:$0xff]
    %593 = vmatprep.subr.mxu0 %v363
    %594 = vmatpush1.msra.mxu0 %v362
    %595 = vmatprep.subr.mxu0 %v366
    %596 = vmatpush1.msra.mxu0 %v365
    %597 = vmatprep.subr.mxu0 %v369
    %598 = vmatpush1.msra.mxu0 %v368
    %599 = vmatprep.subr.mxu0 %v372
    %600 = vmatpush1.msra.mxu0 %v371
    %601 = vmatprep.subr.mxu0 %v375
    %602 = vmatpush1.msra.mxu0 %v374
    %603 = vmatprep.subr.mxu0 %v378
    %604 = vmatpush1.msra.mxu0 %v377
    %605 = vmatprep.subr.mxu0 %v381
    %606 = vmatpush1.msra.mxu0 %v380
    %607 = vmatprep.subr.mxu0 %v384
    %608 = vmatpush1.msra.mxu0 %v383
    %609 = vmatprep.subr.mxu0 %v387
    %610 = vmatpush1.msra.mxu0 %v386
    %611 = vmatprep.subr.mxu0 %v390
    %612 = vmatpush1.msra.mxu0 %v389
    %613 = vmatprep.subr.mxu0 %v393
    %614 = vmatpush1.msra.mxu0 %v392
    %615 = vmatprep.subr.mxu0 %v396
    %616 = vmatpush1.msra.mxu0 %v395
    %617 = vmatprep.subr.mxu0 %v399
    %618 = vmatpush1.msra.mxu0 %v398
    %619 = vmatprep.subr.mxu0 %v402
    %620 = vmatpush1.msra.mxu0 %v401
    %621 = vmatprep.subr.mxu0 %v405
    %622 = vmatpush1.msra.mxu0 %v404
    %623 = vmatprep.subr.mxu0 %v408
    %624 = vmatpush1.msra.mxu0 %v407
    %625 = vmatprep.subr.mxu0 0.0
    %626 = vmatpush1.msra.mxu0 0.0
    %627 = vmatprep.subr.mxu0 0.0
    %628 = vmatpush1.msra.mxu0 0.0
    %629 = vmatprep.subr.mxu0 0.0
    %630 = vmatpush1.msra.mxu0 0.0
    %631 = vmatprep.subr.mxu0 0.0
    %632 = vmatpush1.msra.mxu0 0.0
    %633 = vmatprep.subr.mxu0 0.0
    %634 = vmatpush1.msra.mxu0 0.0
    %635 = vmatprep.subr.mxu0 0.0
    %636 = vmatpush1.msra.mxu0 0.0
    %637 = vmatprep.subr.mxu0 0.0
    %638 = vmatpush1.msra.mxu0 0.0
    %639 = vmatprep.subr.mxu0 0.0
    %640 = vmatpush1.msra.mxu0 0.0
    %641 = vmatprep.subr.mxu0 0.0
    %642 = vmatpush1.msra.mxu0 0.0
    %643 = vmatprep.subr.mxu0 0.0
    %644 = vmatpush1.msra.mxu0 0.0
    %645 = vmatprep.subr.mxu0 0.0
    %646 = vmatpush1.msra.mxu0 0.0
    %647 = vmatprep.subr.mxu0 0.0
    %648 = vmatpush1.msra.mxu0 0.0
    %649 = vmatprep.subr.mxu0 0.0
    %650 = vmatpush1.msra.mxu0 0.0
    %651 = vmatprep.subr.mxu0 0.0
    %652 = vmatpush1.msra.mxu0 0.0
    %653 = vmatprep.subr.mxu0 0.0
    %654 = vmatpush1.msra.mxu0 0.0
    %655 = vmatprep.subr.mxu0 0.0
    %656 = vmatpush1.msra.mxu0 0.0
    %657 = vmatprep.mubr.f32.mxu0 0.0
    %658 = vmatmul.mubr.f32.gmra.mrb[0].mxu0 %v587
    %v659 = vpop.f32.mrb[0].mxu0
    %v660 = vadd.f32 0.0, %v659
    %v661 = vpop.f32.mrb[0].mxu0
    %v662 = vadd.f32 0.0, %v661
    %663 = vdwg.mxu0
    %664 = vmatprep.subr.mxu0 0.0
    %665 = vmatpush1.msra.mxu0 %v364
    %666 = vmatprep.subr.mxu0 0.0
    %667 = vmatpush1.msra.mxu0 %v367
    %668 = vmatprep.subr.mxu0 0.0
    %669 = vmatpush1.msra.mxu0 %v370
    %670 = vmatprep.subr.mxu0 0.0
    %671 = vmatpush1.msra.mxu0 %v373
    %672 = vmatprep.subr.mxu0 0.0
    %673 = vmatpush1.msra.mxu0 %v376
    %674 = vmatprep.subr.mxu0 0.0
    %675 = vmatpush1.msra.mxu0 %v379
    %676 = vmatprep.subr.mxu0 0.0
    %677 = vmatpush1.msra.mxu0 %v382
    %678 = vmatprep.subr.mxu0 0.0
    %679 = vmatpush1.msra.mxu0 %v385
    %680 = vmatprep.subr.mxu0 0.0
    %681 = vmatpush1.msra.mxu0 %v388
    %682 = vmatprep.subr.mxu0 0.0
    %683 = vmatpush1.msra.mxu0 %v391
    %684 = vmatprep.subr.mxu0 0.0
    %685 = vmatpush1.msra.mxu0 %v394
    %686 = vmatprep.subr.mxu0 0.0
    %687 = vmatpush1.msra.mxu0 %v397
    %688 = vmatprep.subr.mxu0 0.0
    %689 = vmatpush1.msra.mxu0 %v400
    %690 = vmatprep.subr.mxu0 0.0
    %691 = vmatpush1.msra.mxu0 %v403
    %692 = vmatprep.subr.mxu0 0.0
    %693 = vmatpush1.msra.mxu0 %v406
    %694 = vmatprep.subr.mxu0 0.0
    %695 = vmatpush1.msra.mxu0 %v409
    %696 = vmatprep.subr.mxu0 0.0
    %697 = vmatpush1.msra.mxu0 0.0
    %698 = vmatprep.subr.mxu0 0.0
    %699 = vmatpush1.msra.mxu0 0.0
    %700 = vmatprep.subr.mxu0 0.0
    %701 = vmatpush1.msra.mxu0 0.0
    %702 = vmatprep.subr.mxu0 0.0
    %703 = vmatpush1.msra.mxu0 0.0
    %704 = vmatprep.subr.mxu0 0.0
    %705 = vmatpush1.msra.mxu0 0.0
    %706 = vmatprep.subr.mxu0 0.0
    %707 = vmatpush1.msra.mxu0 0.0
    %708 = vmatprep.subr.mxu0 0.0
    %709 = vmatpush1.msra.mxu0 0.0
    %710 = vmatprep.subr.mxu0 0.0
    %711 = vmatpush1.msra.mxu0 0.0
    %712 = vmatprep.subr.mxu0 0.0
    %713 = vmatpush1.msra.mxu0 0.0
    %714 = vmatprep.subr.mxu0 0.0
    %715 = vmatpush1.msra.mxu0 0.0
    %716 = vmatprep.subr.mxu0 0.0
    %717 = vmatpush1.msra.mxu0 0.0
    %718 = vmatprep.subr.mxu0 0.0
    %719 = vmatpush1.msra.mxu0 0.0
    %720 = vmatprep.subr.mxu0 0.0
    %721 = vmatpush1.msra.mxu0 0.0
    %722 = vmatprep.subr.mxu0 0.0
    %723 = vmatpush1.msra.mxu0 0.0
    %724 = vmatprep.subr.mxu0 0.0
    %725 = vmatpush1.msra.mxu0 0.0
    %726 = vmatprep.subr.mxu0 0.0
    %727 = vmatpush1.msra.mxu0 0.0
    %728 = vmatprep.mubr.f32.mxu0 0.0
    %729 = vmatmul.mubr.f32.gmra.mrb[0].mxu0 %v587
    %v730 = vpop.f32.mrb[0].mxu0
    %v731 = vadd.f32 0.0, %v730
    %v732 = vpop.f32.mrb[0].mxu0
    %733 = vdwg.mxu0
    %v734 = vadd.f32 %v590, %v660
    %v735 = vxor.u32 %v734, 2147483648
    %v736 = vmul.f32 %v735, 1.442695
    %v737 = vpow.pop %v736
    %v738 = vadd.f32 %v737, 1.0
    %v739 = vrcp.pop %v738
    %v740 = vmul.f32 1.0, %v739
    %v741 = vadd.f32 %v591, %v662
    %v742 = vxor.u32 %v741, 2147483648
    %v743 = vmul.f32 %v742, 1.442695
    %v744 = vpow.pop %v743
    %v745 = vadd.f32 %v744, 1.0
    %v746 = vrcp.pop %v745
    %v747 = vmul.f32 1.0, %v746
    %v748 = vadd.f32 %v731, %v415
    %v749 = vmul.f32 %v740, %v748
    %v750 = vadd.f32 %v592, %v749
    %v751 = vtanh.pop %v750
    %v752 = vsub.f32 1.0, %v747
    %v753 = vmul.f32 %v752, %v751
    %v754 = vmul.f32 %v747, %v587
    %v755 = vadd.f32 %v753, %v754
    %vm756 = vcmp.eq.s32.totalorder %v420, 1
    %v757 = vsel %vm756, %v755, %v589
    %v758 = vld [vmem:[#allocation2 + $0x30] sm:$0xff]
    %v759 = vld [vmem:[#allocation2 + $0x38] sm:$0xff]
    %v760 = vld [vmem:[#allocation2 + $0x40] sm:$0xff]
    %761 = vmatprep.subr.mxu0 %v363
    %762 = vmatpush1.msra.mxu0 %v362
    %763 = vmatprep.subr.mxu0 %v366
    %764 = vmatpush1.msra.mxu0 %v365
    %765 = vmatprep.subr.mxu0 %v369
    %766 = vmatpush1.msra.mxu0 %v368
    %767 = vmatprep.subr.mxu0 %v372
    %768 = vmatpush1.msra.mxu0 %v371
    %769 = vmatprep.subr.mxu0 %v375
    %770 = vmatpush1.msra.mxu0 %v374
    %771 = vmatprep.subr.mxu0 %v378
    %772 = vmatpush1.msra.mxu0 %v377
    %773 = vmatprep.subr.mxu0 %v381
    %774 = vmatpush1.msra.mxu0 %v380
    %775 = vmatprep.subr.mxu0 %v384
    %776 = vmatpush1.msra.mxu0 %v383
    %777 = vmatprep.subr.mxu0 %v387
    %778 = vmatpush1.msra.mxu0 %v386
    %779 = vmatprep.subr.mxu0 %v390
    %780 = vmatpush1.msra.mxu0 %v389
    %781 = vmatprep.subr.mxu0 %v393
    %782 = vmatpush1.msra.mxu0 %v392
    %783 = vmatprep.subr.mxu0 %v396
    %784 = vmatpush1.msra.mxu0 %v395
    %785 = vmatprep.subr.mxu0 %v399
    %786 = vmatpush1.msra.mxu0 %v398
    %787 = vmatprep.subr.mxu0 %v402
    %788 = vmatpush1.msra.mxu0 %v401
    %789 = vmatprep.subr.mxu0 %v405
    %790 = vmatpush1.msra.mxu0 %v404
    %791 = vmatprep.subr.mxu0 %v408
    %792 = vmatpush1.msra.mxu0 %v407
    %793 = vmatprep.subr.mxu0 0.0
    %794 = vmatpush1.msra.mxu0 0.0
    %795 = vmatprep.subr.mxu0 0.0
    %796 = vmatpush1.msra.mxu0 0.0
    %797 = vmatprep.subr.mxu0 0.0
    %798 = vmatpush1.msra.mxu0 0.0
    %799 = vmatprep.subr.mxu0 0.0
    %800 = vmatpush1.msra.mxu0 0.0
    %801 = vmatprep.subr.mxu0 0.0
    %802 = vmatpush1.msra.mxu0 0.0
    %803 = vmatprep.subr.mxu0 0.0
    %804 = vmatpush1.msra.mxu0 0.0
    %805 = vmatprep.subr.mxu0 0.0
    %806 = vmatpush1.msra.mxu0 0.0
    %807 = vmatprep.subr.mxu0 0.0
    %808 = vmatpush1.msra.mxu0 0.0
    %809 = vmatprep.subr.mxu0 0.0
    %810 = vmatpush1.msra.mxu0 0.0
    %811 = vmatprep.subr.mxu0 0.0
    %812 = vmatpush1.msra.mxu0 0.0
    %813 = vmatprep.subr.mxu0 0.0
    %814 = vmatpush1.msra.mxu0 0.0
    %815 = vmatprep.subr.mxu0 0.0
    %816 = vmatpush1.msra.mxu0 0.0
    %817 = vmatprep.subr.mxu0 0.0
    %818 = vmatpush1.msra.mxu0 0.0
    %819 = vmatprep.subr.mxu0 0.0
    %820 = vmatpush1.msra.mxu0 0.0
    %821 = vmatprep.subr.mxu0 0.0
    %822 = vmatpush1.msra.mxu0 0.0
    %823 = vmatprep.subr.mxu0 0.0
    %824 = vmatpush1.msra.mxu0 0.0
    %825 = vmatprep.mubr.f32.mxu0 0.0
    %826 = vmatmul.mubr.f32.gmra.mrb[0].mxu0 %v755
    %v827 = vpop.f32.mrb[0].mxu0
    %v828 = vadd.f32 0.0, %v827
    %v829 = vpop.f32.mrb[0].mxu0
    %v830 = vadd.f32 0.0, %v829
    %831 = vdwg.mxu0
    %832 = vmatprep.subr.mxu0 0.0
    %833 = vmatpush1.msra.mxu0 %v364
    %834 = vmatprep.subr.mxu0 0.0
    %835 = vmatpush1.msra.mxu0 %v367
    %836 = vmatprep.subr.mxu0 0.0
    %837 = vmatpush1.msra.mxu0 %v370
    %838 = vmatprep.subr.mxu0 0.0
    %839 = vmatpush1.msra.mxu0 %v373
    %840 = vmatprep.subr.mxu0 0.0
    %841 = vmatpush1.msra.mxu0 %v376
    %842 = vmatprep.subr.mxu0 0.0
    %843 = vmatpush1.msra.mxu0 %v379
    %844 = vmatprep.subr.mxu0 0.0
    %845 = vmatpush1.msra.mxu0 %v382
    %846 = vmatprep.subr.mxu0 0.0
    %847 = vmatpush1.msra.mxu0 %v385
    %848 = vmatprep.subr.mxu0 0.0
    %849 = vmatpush1.msra.mxu0 %v388
    %850 = vmatprep.subr.mxu0 0.0
    %851 = vmatpush1.msra.mxu0 %v391
    %852 = vmatprep.subr.mxu0 0.0
    %853 = vmatpush1.msra.mxu0 %v394
    %854 = vmatprep.subr.mxu0 0.0
    %855 = vmatpush1.msra.mxu0 %v397
    %856 = vmatprep.subr.mxu0 0.0
    %857 = vmatpush1.msra.mxu0 %v400
    %858 = vmatprep.subr.mxu0 0.0
    %859 = vmatpush1.msra.mxu0 %v403
    %860 = vmatprep.subr.mxu0 0.0
    %861 = vmatpush1.msra.mxu0 %v406
    %862 = vmatprep.subr.mxu0 0.0
    %863 = vmatpush1.msra.mxu0 %v409
    %864 = vmatprep.subr.mxu0 0.0
    %865 = vmatpush1.msra.mxu0 0.0
    %866 = vmatprep.subr.mxu0 0.0
    %867 = vmatpush1.msra.mxu0 0.0
    %868 = vmatprep.subr.mxu0 0.0
    %869 = vmatpush1.msra.mxu0 0.0
    %870 = vmatprep.subr.mxu0 0.0
    %871 = vmatpush1.msra.mxu0 0.0
    %872 = vmatprep.subr.mxu0 0.0
    %873 = vmatpush1.msra.mxu0 0.0
    %874 = vmatprep.subr.mxu0 0.0
    %875 = vmatpush1.msra.mxu0 0.0
    %876 = vmatprep.subr.mxu0 0.0
    %877 = vmatpush1.msra.mxu0 0.0
    %878 = vmatprep.subr.mxu0 0.0
    %879 = vmatpush1.msra.mxu0 0.0
    %880 = vmatprep.subr.mxu0 0.0
    %881 = vmatpush1.msra.mxu0 0.0
    %882 = vmatprep.subr.mxu0 0.0
    %883 = vmatpush1.msra.mxu0 0.0
    %884 = vmatprep.subr.mxu0 0.0
    %885 = vmatpush1.msra.mxu0 0.0
    %886 = vmatprep.subr.mxu0 0.0
    %887 = vmatpush1.msra.mxu0 0.0
    %888 = vmatprep.subr.mxu0 0.0
    %889 = vmatpush1.msra.mxu0 0.0
    %890 = vmatprep.subr.mxu0 0.0
    %891 = vmatpush1.msra.mxu0 0.0
    %892 = vmatprep.subr.mxu0 0.0
    %893 = vmatpush1.msra.mxu0 0.0
    %894 = vmatprep.subr.mxu0 0.0
    %895 = vmatpush1.msra.mxu0 0.0
    %896 = vmatprep.mubr.f32.mxu0 0.0
    %897 = vmatmul.mubr.f32.gmra.mrb[0].mxu0 %v755
    %v898 = vpop.f32.mrb[0].mxu0
    %v899 = vadd.f32 0.0, %v898
    %v900 = vpop.f32.mrb[0].mxu0
    %901 = vdwg.mxu0
    %v902 = vadd.f32 %v758, %v828
    %v903 = vxor.u32 %v902, 2147483648
    %v904 = vmul.f32 %v903, 1.442695
    %v905 = vpow.pop %v904
    %v906 = vadd.f32 %v905, 1.0
    %v907 = vrcp.pop %v906
    %v908 = vmul.f32 1.0, %v907
    %v909 = vadd.f32 %v759, %v830
    %v910 = vxor.u32 %v909, 2147483648
    %v911 = vmul.f32 %v910, 1.442695
    %v912 = vpow.pop %v911
    %v913 = vadd.f32 %v912, 1.0
    %v914 = vrcp.pop %v913
    %v915 = vmul.f32 1.0, %v914
    %v916 = vadd.f32 %v899, %v415
    %v917 = vmul.f32 %v908, %v916
    %v918 = vadd.f32 %v760, %v917
    %v919 = vtanh.pop %v918
    %v920 = vsub.f32 1.0, %v915
    %v921 = vmul.f32 %v920, %v919
    %v922 = vmul.f32 %v915, %v755
    %v923 = vadd.f32 %v921, %v922
    %vm924 = vcmp.eq.s32.totalorder %v420, 2
    %v925 = vsel %vm924, %v923, %v757
    %v926 = vld [vmem:[#allocation2 + $0x48] sm:$0xff]
    %v927 = vld [vmem:[#allocation2 + $0x50] sm:$0xff]
    %v928 = vld [vmem:[#allocation2 + $0x58] sm:$0xff]
    %929 = vmatprep.subr.mxu0 %v363
    %930 = vmatpush1.msra.mxu0 %v362
    %931 = vmatprep.subr.mxu0 %v366
    %932 = vmatpush1.msra.mxu0 %v365
    %933 = vmatprep.subr.mxu0 %v369
    %934 = vmatpush1.msra.mxu0 %v368
    %935 = vmatprep.subr.mxu0 %v372
    %936 = vmatpush1.msra.mxu0 %v371
    %937 = vmatprep.subr.mxu0 %v375
    %938 = vmatpush1.msra.mxu0 %v374
    %939 = vmatprep.subr.mxu0 %v378
    %940 = vmatpush1.msra.mxu0 %v377
    %941 = vmatprep.subr.mxu0 %v381
    %942 = vmatpush1.msra.mxu0 %v380
    %943 = vmatprep.subr.mxu0 %v384
    %944 = vmatpush1.msra.mxu0 %v383
    %945 = vmatprep.subr.mxu0 %v387
    %946 = vmatpush1.msra.mxu0 %v386
    %947 = vmatprep.subr.mxu0 %v390
    %948 = vmatpush1.msra.mxu0 %v389
    %949 = vmatprep.subr.mxu0 %v393
    %950 = vmatpush1.msra.mxu0 %v392
    %951 = vmatprep.subr.mxu0 %v396
    %952 = vmatpush1.msra.mxu0 %v395
    %953 = vmatprep.subr.mxu0 %v399
    %954 = vmatpush1.msra.mxu0 %v398
    %955 = vmatprep.subr.mxu0 %v402
    %956 = vmatpush1.msra.mxu0 %v401
    %957 = vmatprep.subr.mxu0 %v405
    %958 = vmatpush1.msra.mxu0 %v404
    %959 = vmatprep.subr.mxu0 %v408
    %960 = vmatpush1.msra.mxu0 %v407
    %961 = vmatprep.subr.mxu0 0.0
    %962 = vmatpush1.msra.mxu0 0.0
    %963 = vmatprep.subr.mxu0 0.0
    %964 = vmatpush1.msra.mxu0 0.0
    %965 = vmatprep.subr.mxu0 0.0
    %966 = vmatpush1.msra.mxu0 0.0
    %967 = vmatprep.subr.mxu0 0.0
    %968 = vmatpush1.msra.mxu0 0.0
    %969 = vmatprep.subr.mxu0 0.0
    %970 = vmatpush1.msra.mxu0 0.0
    %971 = vmatprep.subr.mxu0 0.0
    %972 = vmatpush1.msra.mxu0 0.0
    %973 = vmatprep.subr.mxu0 0.0
    %974 = vmatpush1.msra.mxu0 0.0
    %975 = vmatprep.subr.mxu0 0.0
    %976 = vmatpush1.msra.mxu0 0.0
    %977 = vmatprep.subr.mxu0 0.0
    %978 = vmatpush1.msra.mxu0 0.0
    %979 = vmatprep.subr.mxu0 0.0
    %980 = vmatpush1.msra.mxu0 0.0
    %981 = vmatprep.subr.mxu0 0.0
    %982 = vmatpush1.msra.mxu0 0.0
    %983 = vmatprep.subr.mxu0 0.0
    %984 = vmatpush1.msra.mxu0 0.0
    %985 = vmatprep.subr.mxu0 0.0
    %986 = vmatpush1.msra.mxu0 0.0
    %987 = vmatprep.subr.mxu0 0.0
    %988 = vmatpush1.msra.mxu0 0.0
    %989 = vmatprep.subr.mxu0 0.0
    %990 = vmatpush1.msra.mxu0 0.0
    %991 = vmatprep.subr.mxu0 0.0
    %992 = vmatpush1.msra.mxu0 0.0
    %993 = vmatprep.mubr.f32.mxu0 0.0
    %994 = vmatmul.mubr.f32.gmra.mrb[0].mxu0 %v923
    %v995 = vpop.f32.mrb[0].mxu0
    %v996 = vadd.f32 0.0, %v995
    %v997 = vpop.f32.mrb[0].mxu0
    %v998 = vadd.f32 0.0, %v997
    %999 = vdwg.mxu0
    %1000 = vmatprep.subr.mxu0 0.0
    %1001 = vmatpush1.msra.mxu0 %v364
    %1002 = vmatprep.subr.mxu0 0.0
    %1003 = vmatpush1.msra.mxu0 %v367
    %1004 = vmatprep.subr.mxu0 0.0
    %1005 = vmatpush1.msra.mxu0 %v370
    %1006 = vmatprep.subr.mxu0 0.0
    %1007 = vmatpush1.msra.mxu0 %v373
    %1008 = vmatprep.subr.mxu0 0.0
    %1009 = vmatpush1.msra.mxu0 %v376
    %1010 = vmatprep.subr.mxu0 0.0
    %1011 = vmatpush1.msra.mxu0 %v379
    %1012 = vmatprep.subr.mxu0 0.0
    %1013 = vmatpush1.msra.mxu0 %v382
    %1014 = vmatprep.subr.mxu0 0.0
    %1015 = vmatpush1.msra.mxu0 %v385
    %1016 = vmatprep.subr.mxu0 0.0
    %1017 = vmatpush1.msra.mxu0 %v388
    %1018 = vmatprep.subr.mxu0 0.0
    %1019 = vmatpush1.msra.mxu0 %v391
    %1020 = vmatprep.subr.mxu0 0.0
    %1021 = vmatpush1.msra.mxu0 %v394
    %1022 = vmatprep.subr.mxu0 0.0
    %1023 = vmatpush1.msra.mxu0 %v397
    %1024 = vmatprep.subr.mxu0 0.0
    %1025 = vmatpush1.msra.mxu0 %v400
    %1026 = vmatprep.subr.mxu0 0.0
    %1027 = vmatpush1.msra.mxu0 %v403
    %1028 = vmatprep.subr.mxu0 0.0
    %1029 = vmatpush1.msra.mxu0 %v406
    %1030 = vmatprep.subr.mxu0 0.0
    %1031 = vmatpush1.msra.mxu0 %v409
    %1032 = vmatprep.subr.mxu0 0.0
    %1033 = vmatpush1.msra.mxu0 0.0
    %1034 = vmatprep.subr.mxu0 0.0
    %1035 = vmatpush1.msra.mxu0 0.0
    %1036 = vmatprep.subr.mxu0 0.0
    %1037 = vmatpush1.msra.mxu0 0.0
    %1038 = vmatprep.subr.mxu0 0.0
    %1039 = vmatpush1.msra.mxu0 0.0
    %1040 = vmatprep.subr.mxu0 0.0
    %1041 = vmatpush1.msra.mxu0 0.0
    %1042 = vmatprep.subr.mxu0 0.0
    %1043 = vmatpush1.msra.mxu0 0.0
    %1044 = vmatprep.subr.mxu0 0.0
    %1045 = vmatpush1.msra.mxu0 0.0
    %1046 = vmatprep.subr.mxu0 0.0
    %1047 = vmatpush1.msra.mxu0 0.0
    %1048 = vmatprep.subr.mxu0 0.0
    %1049 = vmatpush1.msra.mxu0 0.0
    %1050 = vmatprep.subr.mxu0 0.0
    %1051 = vmatpush1.msra.mxu0 0.0
    %1052 = vmatprep.subr.mxu0 0.0
    %1053 = vmatpush1.msra.mxu0 0.0
    %1054 = vmatprep.subr.mxu0 0.0
    %1055 = vmatpush1.msra.mxu0 0.0
    %1056 = vmatprep.subr.mxu0 0.0
    %1057 = vmatpush1.msra.mxu0 0.0
    %1058 = vmatprep.subr.mxu0 0.0
    %1059 = vmatpush1.msra.mxu0 0.0
    %1060 = vmatprep.subr.mxu0 0.0
    %1061 = vmatpush1.msra.mxu0 0.0
    %1062 = vmatprep.subr.mxu0 0.0
    %1063 = vmatpush1.msra.mxu0 0.0
    %1064 = vmatprep.mubr.f32.mxu0 0.0
    %1065 = vmatmul.mubr.f32.gmra.mrb[0].mxu0 %v923
    %v1066 = vpop.f32.mrb[0].mxu0
    %v1067 = vadd.f32 0.0, %v1066
    %v1068 = vpop.f32.mrb[0].mxu0
    %1069 = vdwg.mxu0
    %v1070 = vadd.f32 %v926, %v996
    %v1071 = vxor.u32 %v1070, 2147483648
    %v1072 = vmul.f32 %v1071, 1.442695
    %v1073 = vpow.pop %v1072
    %v1074 = vadd.f32 %v1073, 1.0
    %v1075 = vrcp.pop %v1074
    %v1076 = vmul.f32 1.0, %v1075
    %v1077 = vadd.f32 %v927, %v998
    %v1078 = vxor.u32 %v1077, 2147483648
    %v1079 = vmul.f32 %v1078, 1.442695
    %v1080 = vpow.pop %v1079
    %v1081 = vadd.f32 %v1080, 1.0
    %v1082 = vrcp.pop %v1081
    %v1083 = vmul.f32 1.0, %v1082
    %v1084 = vadd.f32 %v1067, %v415
    %v1085 = vmul.f32 %v1076, %v1084
    %v1086 = vadd.f32 %v928, %v1085
    %v1087 = vtanh.pop %v1086
    %v1088 = vsub.f32 1.0, %v1083
    %v1089 = vmul.f32 %v1088, %v1087
    %v1090 = vmul.f32 %v1083, %v923
    %v1091 = vadd.f32 %v1089, %v1090
    %vm1092 = vcmp.eq.s32.totalorder %v420, 3
    %v1093 = vsel %vm1092, %v1091, %v925
    %v1094 = vld [vmem:[#allocation2 + $0x60] sm:$0xff]
    %v1095 = vld [vmem:[#allocation2 + $0x68] sm:$0xff]
    %v1096 = vld [vmem:[#allocation2 + $0x70] sm:$0xff]
    %1097 = vmatprep.subr.mxu0 %v363
    %1098 = vmatpush1.msra.mxu0 %v362
    %1099 = vmatprep.subr.mxu0 %v366
    %1100 = vmatpush1.msra.mxu0 %v365
    %1101 = vmatprep.subr.mxu0 %v369
    %1102 = vmatpush1.msra.mxu0 %v368
    %1103 = vmatprep.subr.mxu0 %v372
    %1104 = vmatpush1.msra.mxu0 %v371
    %1105 = vmatprep.subr.mxu0 %v375
    %1106 = vmatpush1.msra.mxu0 %v374
    %1107 = vmatprep.subr.mxu0 %v378
    %1108 = vmatpush1.msra.mxu0 %v377
    %1109 = vmatprep.subr.mxu0 %v381
    %1110 = vmatpush1.msra.mxu0 %v380
    %1111 = vmatprep.subr.mxu0 %v384
    %1112 = vmatpush1.msra.mxu0 %v383
    %1113 = vmatprep.subr.mxu0 %v387
    %1114 = vmatpush1.msra.mxu0 %v386
    %1115 = vmatprep.subr.mxu0 %v390
    %1116 = vmatpush1.msra.mxu0 %v389
    %1117 = vmatprep.subr.mxu0 %v393
    %1118 = vmatpush1.msra.mxu0 %v392
    %1119 = vmatprep.subr.mxu0 %v396
    %1120 = vmatpush1.msra.mxu0 %v395
    %1121 = vmatprep.subr.mxu0 %v399
    %1122 = vmatpush1.msra.mxu0 %v398
    %1123 = vmatprep.subr.mxu0 %v402
    %1124 = vmatpush1.msra.mxu0 %v401
    %1125 = vmatprep.subr.mxu0 %v405
    %1126 = vmatpush1.msra.mxu0 %v404
    %1127 = vmatprep.subr.mxu0 %v408
    %1128 = vmatpush1.msra.mxu0 %v407
    %1129 = vmatprep.subr.mxu0 0.0
    %1130 = vmatpush1.msra.mxu0 0.0
    %1131 = vmatprep.subr.mxu0 0.0
    %1132 = vmatpush1.msra.mxu0 0.0
    %1133 = vmatprep.subr.mxu0 0.0
    %1134 = vmatpush1.msra.mxu0 0.0
    %1135 = vmatprep.subr.mxu0 0.0
    %1136 = vmatpush1.msra.mxu0 0.0
    %1137 = vmatprep.subr.mxu0 0.0
    %1138 = vmatpush1.msra.mxu0 0.0
    %1139 = vmatprep.subr.mxu0 0.0
    %1140 = vmatpush1.msra.mxu0 0.0
    %1141 = vmatprep.subr.mxu0 0.0
    %1142 = vmatpush1.msra.mxu0 0.0
    %1143 = vmatprep.subr.mxu0 0.0
    %1144 = vmatpush1.msra.mxu0 0.0
    %1145 = vmatprep.subr.mxu0 0.0
    %1146 = vmatpush1.msra.mxu0 0.0
    %1147 = vmatprep.subr.mxu0 0.0
    %1148 = vmatpush1.msra.mxu0 0.0
    %1149 = vmatprep.subr.mxu0 0.0
    %1150 = vmatpush1.msra.mxu0 0.0
    %1151 = vmatprep.subr.mxu0 0.0
    %1152 = vmatpush1.msra.mxu0 0.0
    %1153 = vmatprep.subr.mxu0 0.0
    %1154 = vmatpush1.msra.mxu0 0.0
    %1155 = vmatprep.subr.mxu0 0.0
    %1156 = vmatpush1.msra.mxu0 0.0
    %1157 = vmatprep.subr.mxu0 0.0
    %1158 = vmatpush1.msra.mxu0 0.0
    %1159 = vmatprep.subr.mxu0 0.0
    %1160 = vmatpush1.msra.mxu0 0.0
    %1161 = vmatprep.mubr.f32.mxu0 0.0
    %1162 = vmatmul.mubr.f32.gmra.mrb[0].mxu0 %v1091
    %v1163 = vpop.f32.mrb[0].mxu0
    %v1164 = vadd.f32 0.0, %v1163
    %v1165 = vpop.f32.mrb[0].mxu0
    %v1166 = vadd.f32 0.0, %v1165
    %1167 = vdwg.mxu0
    %1168 = vmatprep.subr.mxu0 0.0
    %1169 = vmatpush1.msra.mxu0 %v364
    %1170 = vmatprep.subr.mxu0 0.0
    %1171 = vmatpush1.msra.mxu0 %v367
    %1172 = vmatprep.subr.mxu0 0.0
    %1173 = vmatpush1.msra.mxu0 %v370
    %1174 = vmatprep.subr.mxu0 0.0
    %1175 = vmatpush1.msra.mxu0 %v373
    %1176 = vmatprep.subr.mxu0 0.0
    %1177 = vmatpush1.msra.mxu0 %v376
    %1178 = vmatprep.subr.mxu0 0.0
    %1179 = vmatpush1.msra.mxu0 %v379
    %1180 = vmatprep.subr.mxu0 0.0
    %1181 = vmatpush1.msra.mxu0 %v382
    %1182 = vmatprep.subr.mxu0 0.0
    %1183 = vmatpush1.msra.mxu0 %v385
    %1184 = vmatprep.subr.mxu0 0.0
    %1185 = vmatpush1.msra.mxu0 %v388
    %1186 = vmatprep.subr.mxu0 0.0
    %1187 = vmatpush1.msra.mxu0 %v391
    %1188 = vmatprep.subr.mxu0 0.0
    %1189 = vmatpush1.msra.mxu0 %v394
    %1190 = vmatprep.subr.mxu0 0.0
    %1191 = vmatpush1.msra.mxu0 %v397
    %1192 = vmatprep.subr.mxu0 0.0
    %1193 = vmatpush1.msra.mxu0 %v400
    %1194 = vmatprep.subr.mxu0 0.0
    %1195 = vmatpush1.msra.mxu0 %v403
    %1196 = vmatprep.subr.mxu0 0.0
    %1197 = vmatpush1.msra.mxu0 %v406
    %1198 = vmatprep.subr.mxu0 0.0
    %1199 = vmatpush1.msra.mxu0 %v409
    %1200 = vmatprep.subr.mxu0 0.0
    %1201 = vmatpush1.msra.mxu0 0.0
    %1202 = vmatprep.subr.mxu0 0.0
    %1203 = vmatpush1.msra.mxu0 0.0
    %1204 = vmatprep.subr.mxu0 0.0
    %1205 = vmatpush1.msra.mxu0 0.0
    %1206 = vmatprep.subr.mxu0 0.0
    %1207 = vmatpush1.msra.mxu0 0.0
    %1208 = vmatprep.subr.mxu0 0.0
    %1209 = vmatpush1.msra.mxu0 0.0
    %1210 = vmatprep.subr.mxu0 0.0
    %1211 = vmatpush1.msra.mxu0 0.0
    %1212 = vmatprep.subr.mxu0 0.0
    %1213 = vmatpush1.msra.mxu0 0.0
    %1214 = vmatprep.subr.mxu0 0.0
    %1215 = vmatpush1.msra.mxu0 0.0
    %1216 = vmatprep.subr.mxu0 0.0
    %1217 = vmatpush1.msra.mxu0 0.0
    %1218 = vmatprep.subr.mxu0 0.0
    %1219 = vmatpush1.msra.mxu0 0.0
    %1220 = vmatprep.subr.mxu0 0.0
    %1221 = vmatpush1.msra.mxu0 0.0
    %1222 = vmatprep.subr.mxu0 0.0
    %1223 = vmatpush1.msra.mxu0 0.0
    %1224 = vmatprep.subr.mxu0 0.0
    %1225 = vmatpush1.msra.mxu0 0.0
    %1226 = vmatprep.subr.mxu0 0.0
    %1227 = vmatpush1.msra.mxu0 0.0
    %1228 = vmatprep.subr.mxu0 0.0
    %1229 = vmatpush1.msra.mxu0 0.0
    %1230 = vmatprep.subr.mxu0 0.0
    %1231 = vmatpush1.msra.mxu0 0.0
    %1232 = vmatprep.mubr.f32.mxu0 0.0
    %1233 = vmatmul.mubr.f32.gmra.mrb[0].mxu0 %v1091
    %v1234 = vpop.f32.mrb[0].mxu0
    %v1235 = vadd.f32 0.0, %v1234
    %v1236 = vpop.f32.mrb[0].mxu0
    %1237 = vdwg.mxu0
    %v1238 = vadd.f32 %v1094, %v1164
    %v1239 = vxor.u32 %v1238, 2147483648
    %v1240 = vmul.f32 %v1239, 1.442695
    %v1241 = vpow.pop %v1240
    %v1242 = vadd.f32 %v1241, 1.0
    %v1243 = vrcp.pop %v1242
    %v1244 = vmul.f32 1.0, %v1243
    %v1245 = vadd.f32 %v1095, %v1166
    %v1246 = vxor.u32 %v1245, 2147483648
    %v1247 = vmul.f32 %v1246, 1.442695
    %v1248 = vpow.pop %v1247
    %v1249 = vadd.f32 %v1248, 1.0
    %v1250 = vrcp.pop %v1249
    %v1251 = vmul.f32 1.0, %v1250
    %v1252 = vadd.f32 %v1235, %v415
    %v1253 = vmul.f32 %v1244, %v1252
    %v1254 = vadd.f32 %v1096, %v1253
    %v1255 = vtanh.pop %v1254
    %v1256 = vsub.f32 1.0, %v1251
    %v1257 = vmul.f32 %v1256, %v1255
    %v1258 = vmul.f32 %v1251, %v1091
    %v1259 = vadd.f32 %v1257, %v1258
    %vm1260 = vcmp.eq.s32.totalorder %v420, 4
    %v1261 = vsel %vm1260, %v1259, %v1093
    %v1262 = vld [vmem:[#allocation2 + $0x78] sm:$0xff]
    %v1263 = vld [vmem:[#allocation2 + $0x80] sm:$0xff]
    %v1264 = vld [vmem:[#allocation2 + $0x88] sm:$0xff]
    %1265 = vmatprep.subr.mxu0 %v363
    %1266 = vmatpush1.msra.mxu0 %v362
    %1267 = vmatprep.subr.mxu0 %v366
    %1268 = vmatpush1.msra.mxu0 %v365
    %1269 = vmatprep.subr.mxu0 %v369
    %1270 = vmatpush1.msra.mxu0 %v368
    %1271 = vmatprep.subr.mxu0 %v372
    %1272 = vmatpush1.msra.mxu0 %v371
    %1273 = vmatprep.subr.mxu0 %v375
    %1274 = vmatpush1.msra.mxu0 %v374
    %1275 = vmatprep.subr.mxu0 %v378
    %1276 = vmatpush1.msra.mxu0 %v377
    %1277 = vmatprep.subr.mxu0 %v381
    %1278 = vmatpush1.msra.mxu0 %v380
    %1279 = vmatprep.subr.mxu0 %v384
    %1280 = vmatpush1.msra.mxu0 %v383
    %1281 = vmatprep.subr.mxu0 %v387
    %1282 = vmatpush1.msra.mxu0 %v386
    %1283 = vmatprep.subr.mxu0 %v390
    %1284 = vmatpush1.msra.mxu0 %v389
    %1285 = vmatprep.subr.mxu0 %v393
    %1286 = vmatpush1.msra.mxu0 %v392
    %1287 = vmatprep.subr.mxu0 %v396
    %1288 = vmatpush1.msra.mxu0 %v395
    %1289 = vmatprep.subr.mxu0 %v399
    %1290 = vmatpush1.msra.mxu0 %v398
    %1291 = vmatprep.subr.mxu0 %v402
    %1292 = vmatpush1.msra.mxu0 %v401
    %1293 = vmatprep.subr.mxu0 %v405
    %1294 = vmatpush1.msra.mxu0 %v404
    %1295 = vmatprep.subr.mxu0 %v408
    %1296 = vmatpush1.msra.mxu0 %v407
    %1297 = vmatprep.subr.mxu0 0.0
    %1298 = vmatpush1.msra.mxu0 0.0
    %1299 = vmatprep.subr.mxu0 0.0
    %1300 = vmatpush1.msra.mxu0 0.0
    %1301 = vmatprep.subr.mxu0 0.0
    %1302 = vmatpush1.msra.mxu0 0.0
    %1303 = vmatprep.subr.mxu0 0.0
    %1304 = vmatpush1.msra.mxu0 0.0
    %1305 = vmatprep.subr.mxu0 0.0
    %1306 = vmatpush1.msra.mxu0 0.0
    %1307 = vmatprep.subr.mxu0 0.0
    %1308 = vmatpush1.msra.mxu0 0.0
    %1309 = vmatprep.subr.mxu0 0.0
    %1310 = vmatpush1.msra.mxu0 0.0
    %1311 = vmatprep.subr.mxu0 0.0
    %1312 = vmatpush1.msra.mxu0 0.0
    %1313 = vmatprep.subr.mxu0 0.0
    %1314 = vmatpush1.msra.mxu0 0.0
    %1315 = vmatprep.subr.mxu0 0.0
    %1316 = vmatpush1.msra.mxu0 0.0
    %1317 = vmatprep.subr.mxu0 0.0
    %1318 = vmatpush1.msra.mxu0 0.0
    %1319 = vmatprep.subr.mxu0 0.0
    %1320 = vmatpush1.msra.mxu0 0.0
    %1321 = vmatprep.subr.mxu0 0.0
    %1322 = vmatpush1.msra.mxu0 0.0
    %1323 = vmatprep.subr.mxu0 0.0
    %1324 = vmatpush1.msra.mxu0 0.0
    %1325 = vmatprep.subr.mxu0 0.0
    %1326 = vmatpush1.msra.mxu0 0.0
    %1327 = vmatprep.subr.mxu0 0.0
    %1328 = vmatpush1.msra.mxu0 0.0
    %1329 = vmatprep.mubr.f32.mxu0 0.0
    %1330 = vmatmul.mubr.f32.gmra.mrb[0].mxu0 %v1259
    %v1331 = vpop.f32.mrb[0].mxu0
    %v1332 = vadd.f32 0.0, %v1331
    %v1333 = vpop.f32.mrb[0].mxu0
    %v1334 = vadd.f32 0.0, %v1333
    %1335 = vdwg.mxu0
    %1336 = vmatprep.subr.mxu0 0.0
    %1337 = vmatpush1.msra.mxu0 %v364
    %1338 = vmatprep.subr.mxu0 0.0
    %1339 = vmatpush1.msra.mxu0 %v367
    %1340 = vmatprep.subr.mxu0 0.0
    %1341 = vmatpush1.msra.mxu0 %v370
    %1342 = vmatprep.subr.mxu0 0.0
    %1343 = vmatpush1.msra.mxu0 %v373
    %1344 = vmatprep.subr.mxu0 0.0
    %1345 = vmatpush1.msra.mxu0 %v376
    %1346 = vmatprep.subr.mxu0 0.0
    %1347 = vmatpush1.msra.mxu0 %v379
    %1348 = vmatprep.subr.mxu0 0.0
    %1349 = vmatpush1.msra.mxu0 %v382
    %1350 = vmatprep.subr.mxu0 0.0
    %1351 = vmatpush1.msra.mxu0 %v385
    %1352 = vmatprep.subr.mxu0 0.0
    %1353 = vmatpush1.msra.mxu0 %v388
    %1354 = vmatprep.subr.mxu0 0.0
    %1355 = vmatpush1.msra.mxu0 %v391
    %1356 = vmatprep.subr.mxu0 0.0
    %1357 = vmatpush1.msra.mxu0 %v394
    %1358 = vmatprep.subr.mxu0 0.0
    %1359 = vmatpush1.msra.mxu0 %v397
    %1360 = vmatprep.subr.mxu0 0.0
    %1361 = vmatpush1.msra.mxu0 %v400
    %1362 = vmatprep.subr.mxu0 0.0
    %1363 = vmatpush1.msra.mxu0 %v403
    %1364 = vmatprep.subr.mxu0 0.0
    %1365 = vmatpush1.msra.mxu0 %v406
    %1366 = vmatprep.subr.mxu0 0.0
    %1367 = vmatpush1.msra.mxu0 %v409
    %1368 = vmatprep.subr.mxu0 0.0
    %1369 = vmatpush1.msra.mxu0 0.0
    %1370 = vmatprep.subr.mxu0 0.0
    %1371 = vmatpush1.msra.mxu0 0.0
    %1372 = vmatprep.subr.mxu0 0.0
    %1373 = vmatpush1.msra.mxu0 0.0
    %1374 = vmatprep.subr.mxu0 0.0
    %1375 = vmatpush1.msra.mxu0 0.0
    %1376 = vmatprep.subr.mxu0 0.0
    %1377 = vmatpush1.msra.mxu0 0.0
    %1378 = vmatprep.subr.mxu0 0.0
    %1379 = vmatpush1.msra.mxu0 0.0
    %1380 = vmatprep.subr.mxu0 0.0
    %1381 = vmatpush1.msra.mxu0 0.0
    %1382 = vmatprep.subr.mxu0 0.0
    %1383 = vmatpush1.msra.mxu0 0.0
    %1384 = vmatprep.subr.mxu0 0.0
    %1385 = vmatpush1.msra.mxu0 0.0
    %1386 = vmatprep.subr.mxu0 0.0
    %1387 = vmatpush1.msra.mxu0 0.0
    %1388 = vmatprep.subr.mxu0 0.0
    %1389 = vmatpush1.msra.mxu0 0.0
    %1390 = vmatprep.subr.mxu0 0.0
    %1391 = vmatpush1.msra.mxu0 0.0
    %1392 = vmatprep.subr.mxu0 0.0
    %1393 = vmatpush1.msra.mxu0 0.0
    %1394 = vmatprep.subr.mxu0 0.0
    %1395 = vmatpush1.msra.mxu0 0.0
    %1396 = vmatprep.subr.mxu0 0.0
    %1397 = vmatpush1.msra.mxu0 0.0
    %1398 = vmatprep.subr.mxu0 0.0
    %1399 = vmatpush1.msra.mxu0 0.0
    %1400 = vmatprep.mubr.f32.mxu0 0.0
    %1401 = vmatmul.mubr.f32.gmra.mrb[0].mxu0 %v1259
    %v1402 = vpop.f32.mrb[0].mxu0
    %v1403 = vadd.f32 0.0, %v1402
    %v1404 = vpop.f32.mrb[0].mxu0
    %1405 = vdwg.mxu0
    %v1406 = vadd.f32 %v1262, %v1332
    %v1407 = vxor.u32 %v1406, 2147483648
    %v1408 = vmul.f32 %v1407, 1.442695
    %v1409 = vpow.pop %v1408
    %v1410 = vadd.f32 %v1409, 1.0
    %v1411 = vrcp.pop %v1410
    %v1412 = vmul.f32 1.0, %v1411
    %v1413 = vadd.f32 %v1263, %v1334
    %v1414 = vxor.u32 %v1413, 2147483648
    %v1415 = vmul.f32 %v1414, 1.442695
    %v1416 = vpow.pop %v1415
    %v1417 = vadd.f32 %v1416, 1.0
    %v1418 = vrcp.pop %v1417
    %v1419 = vmul.f32 1.0, %v1418
    %v1420 = vadd.f32 %v1403, %v415
    %v1421 = vmul.f32 %v1412, %v1420
    %v1422 = vadd.f32 %v1264, %v1421
    %v1423 = vtanh.pop %v1422
    %v1424 = vsub.f32 1.0, %v1419
    %v1425 = vmul.f32 %v1424, %v1423
    %v1426 = vmul.f32 %v1419, %v1259
    %v1427 = vadd.f32 %v1425, %v1426
    %vm1428 = vcmp.eq.s32.totalorder %v420, 5
    %v1429 = vsel %vm1428, %v1427, %v1261
    %v1430 = vld [vmem:[#allocation2 + $0x90] sm:$0xff]
    %v1431 = vld [vmem:[#allocation2 + $0x98] sm:$0xff]
    %v1432 = vld [vmem:[#allocation2 + $0xa0] sm:$0xff]
    %1433 = vmatprep.subr.mxu0 %v363
    %1434 = vmatpush1.msra.mxu0 %v362
    %1435 = vmatprep.subr.mxu0 %v366
    %1436 = vmatpush1.msra.mxu0 %v365
    %1437 = vmatprep.subr.mxu0 %v369
    %1438 = vmatpush1.msra.mxu0 %v368
    %1439 = vmatprep.subr.mxu0 %v372
    %1440 = vmatpush1.msra.mxu0 %v371
    %1441 = vmatprep.subr.mxu0 %v375
    %1442 = vmatpush1.msra.mxu0 %v374
    %1443 = vmatprep.subr.mxu0 %v378
    %1444 = vmatpush1.msra.mxu0 %v377
    %1445 = vmatprep.subr.mxu0 %v381
    %1446 = vmatpush1.msra.mxu0 %v380
    %1447 = vmatprep.subr.mxu0 %v384
    %1448 = vmatpush1.msra.mxu0 %v383
    %1449 = vmatprep.subr.mxu0 %v387
    %1450 = vmatpush1.msra.mxu0 %v386
    %1451 = vmatprep.subr.mxu0 %v390
    %1452 = vmatpush1.msra.mxu0 %v389
    %1453 = vmatprep.subr.mxu0 %v393
    %1454 = vmatpush1.msra.mxu0 %v392
    %1455 = vmatprep.subr.mxu0 %v396
    %1456 = vmatpush1.msra.mxu0 %v395
    %1457 = vmatprep.subr.mxu0 %v399
    %1458 = vmatpush1.msra.mxu0 %v398
    %1459 = vmatprep.subr.mxu0 %v402
    %1460 = vmatpush1.msra.mxu0 %v401
    %1461 = vmatprep.subr.mxu0 %v405
    %1462 = vmatpush1.msra.mxu0 %v404
    %1463 = vmatprep.subr.mxu0 %v408
    %1464 = vmatpush1.msra.mxu0 %v407
    %1465 = vmatprep.subr.mxu0 0.0
    %1466 = vmatpush1.msra.mxu0 0.0
    %1467 = vmatprep.subr.mxu0 0.0
    %1468 = vmatpush1.msra.mxu0 0.0
    %1469 = vmatprep.subr.mxu0 0.0
    %1470 = vmatpush1.msra.mxu0 0.0
    %1471 = vmatprep.subr.mxu0 0.0
    %1472 = vmatpush1.msra.mxu0 0.0
    %1473 = vmatprep.subr.mxu0 0.0
    %1474 = vmatpush1.msra.mxu0 0.0
    %1475 = vmatprep.subr.mxu0 0.0
    %1476 = vmatpush1.msra.mxu0 0.0
    %1477 = vmatprep.subr.mxu0 0.0
    %1478 = vmatpush1.msra.mxu0 0.0
    %1479 = vmatprep.subr.mxu0 0.0
    %1480 = vmatpush1.msra.mxu0 0.0
    %1481 = vmatprep.subr.mxu0 0.0
    %1482 = vmatpush1.msra.mxu0 0.0
    %1483 = vmatprep.subr.mxu0 0.0
    %1484 = vmatpush1.msra.mxu0 0.0
    %1485 = vmatprep.subr.mxu0 0.0
    %1486 = vmatpush1.msra.mxu0 0.0
    %1487 = vmatprep.subr.mxu0 0.0
    %1488 = vmatpush1.msra.mxu0 0.0
    %1489 = vmatprep.subr.mxu0 0.0
    %1490 = vmatpush1.msra.mxu0 0.0
    %1491 = vmatprep.subr.mxu0 0.0
    %1492 = vmatpush1.msra.mxu0 0.0
    %1493 = vmatprep.subr.mxu0 0.0
    %1494 = vmatpush1.msra.mxu0 0.0
    %1495 = vmatprep.subr.mxu0 0.0
    %1496 = vmatpush1.msra.mxu0 0.0
    %1497 = vmatprep.mubr.f32.mxu0 0.0
    %1498 = vmatmul.mubr.f32.gmra.mrb[0].mxu0 %v1427
    %v1499 = vpop.f32.mrb[0].mxu0
    %v1500 = vadd.f32 0.0, %v1499
    %v1501 = vpop.f32.mrb[0].mxu0
    %v1502 = vadd.f32 0.0, %v1501
    %1503 = vdwg.mxu0
    %1504 = vmatprep.subr.mxu0 0.0
    %1505 = vmatpush1.msra.mxu0 %v364
    %1506 = vmatprep.subr.mxu0 0.0
    %1507 = vmatpush1.msra.mxu0 %v367
    %1508 = vmatprep.subr.mxu0 0.0
    %1509 = vmatpush1.msra.mxu0 %v370
    %1510 = vmatprep.subr.mxu0 0.0
    %1511 = vmatpush1.msra.mxu0 %v373
    %1512 = vmatprep.subr.mxu0 0.0
    %1513 = vmatpush1.msra.mxu0 %v376
    %1514 = vmatprep.subr.mxu0 0.0
    %1515 = vmatpush1.msra.mxu0 %v379
    %1516 = vmatprep.subr.mxu0 0.0
    %1517 = vmatpush1.msra.mxu0 %v382
    %1518 = vmatprep.subr.mxu0 0.0
    %1519 = vmatpush1.msra.mxu0 %v385
    %1520 = vmatprep.subr.mxu0 0.0
    %1521 = vmatpush1.msra.mxu0 %v388
    %1522 = vmatprep.subr.mxu0 0.0
    %1523 = vmatpush1.msra.mxu0 %v391
    %1524 = vmatprep.subr.mxu0 0.0
    %1525 = vmatpush1.msra.mxu0 %v394
    %1526 = vmatprep.subr.mxu0 0.0
    %1527 = vmatpush1.msra.mxu0 %v397
    %1528 = vmatprep.subr.mxu0 0.0
    %1529 = vmatpush1.msra.mxu0 %v400
    %1530 = vmatprep.subr.mxu0 0.0
    %1531 = vmatpush1.msra.mxu0 %v403
    %1532 = vmatprep.subr.mxu0 0.0
    %1533 = vmatpush1.msra.mxu0 %v406
    %1534 = vmatprep.subr.mxu0 0.0
    %1535 = vmatpush1.msra.mxu0 %v409
    %1536 = vmatprep.subr.mxu0 0.0
    %1537 = vmatpush1.msra.mxu0 0.0
    %1538 = vmatprep.subr.mxu0 0.0
    %1539 = vmatpush1.msra.mxu0 0.0
    %1540 = vmatprep.subr.mxu0 0.0
    %1541 = vmatpush1.msra.mxu0 0.0
    %1542 = vmatprep.subr.mxu0 0.0
    %1543 = vmatpush1.msra.mxu0 0.0
    %1544 = vmatprep.subr.mxu0 0.0
    %1545 = vmatpush1.msra.mxu0 0.0
    %1546 = vmatprep.subr.mxu0 0.0
    %1547 = vmatpush1.msra.mxu0 0.0
    %1548 = vmatprep.subr.mxu0 0.0
    %1549 = vmatpush1.msra.mxu0 0.0
    %1550 = vmatprep.subr.mxu0 0.0
    %1551 = vmatpush1.msra.mxu0 0.0
    %1552 = vmatprep.subr.mxu0 0.0
    %1553 = vmatpush1.msra.mxu0 0.0
    %1554 = vmatprep.subr.mxu0 0.0
    %1555 = vmatpush1.msra.mxu0 0.0
    %1556 = vmatprep.subr.mxu0 0.0
    %1557 = vmatpush1.msra.mxu0 0.0
    %1558 = vmatprep.subr.mxu0 0.0
    %1559 = vmatpush1.msra.mxu0 0.0
    %1560 = vmatprep.subr.mxu0 0.0
    %1561 = vmatpush1.msra.mxu0 0.0
    %1562 = vmatprep.subr.mxu0 0.0
    %1563 = vmatpush1.msra.mxu0 0.0
    %1564 = vmatprep.subr.mxu0 0.0
    %1565 = vmatpush1.msra.mxu0 0.0
    %1566 = vmatprep.subr.mxu0 0.0
    %1567 = vmatpush1.msra.mxu0 0.0
    %1568 = vmatprep.mubr.f32.mxu0 0.0
    %1569 = vmatmul.mubr.f32.gmra.mrb[0].mxu0 %v1427
    %v1570 = vpop.f32.mrb[0].mxu0
    %v1571 = vadd.f32 0.0, %v1570
    %v1572 = vpop.f32.mrb[0].mxu0
    %1573 = vdwg.mxu0
    %v1574 = vadd.f32 %v1430, %v1500
    %v1575 = vxor.u32 %v1574, 2147483648
    %v1576 = vmul.f32 %v1575, 1.442695
    %v1577 = vpow.pop %v1576
    %v1578 = vadd.f32 %v1577, 1.0
    %v1579 = vrcp.pop %v1578
    %v1580 = vmul.f32 1.0, %v1579
    %v1581 = vadd.f32 %v1431, %v1502
    %v1582 = vxor.u32 %v1581, 2147483648
    %v1583 = vmul.f32 %v1582, 1.442695
    %v1584 = vpow.pop %v1583
    %v1585 = vadd.f32 %v1584, 1.0
    %v1586 = vrcp.pop %v1585
    %v1587 = vmul.f32 1.0, %v1586
    %v1588 = vadd.f32 %v1571, %v415
    %v1589 = vmul.f32 %v1580, %v1588
    %v1590 = vadd.f32 %v1432, %v1589
    %v1591 = vtanh.pop %v1590
    %v1592 = vsub.f32 1.0, %v1587
    %v1593 = vmul.f32 %v1592, %v1591
    %v1594 = vmul.f32 %v1587, %v1427
    %v1595 = vadd.f32 %v1593, %v1594
    %vm1596 = vcmp.eq.s32.totalorder %v420, 6
    %v1597 = vsel %vm1596, %v1595, %v1429
    %v1598 = vld [vmem:[#allocation2 + $0xa8] sm:$0xff]
    %v1599 = vld [vmem:[#allocation2 + $0xb0] sm:$0xff]
    %v1600 = vld [vmem:[#allocation2 + $0xb8] sm:$0xff]
    %1601 = vmatprep.subr.mxu0 %v363
    %1602 = vmatpush1.msra.mxu0 %v362
    %1603 = vmatprep.subr.mxu0 %v366
    %1604 = vmatpush1.msra.mxu0 %v365
    %1605 = vmatprep.subr.mxu0 %v369
    %1606 = vmatpush1.msra.mxu0 %v368
    %1607 = vmatprep.subr.mxu0 %v372
    %1608 = vmatpush1.msra.mxu0 %v371
    %1609 = vmatprep.subr.mxu0 %v375
    %1610 = vmatpush1.msra.mxu0 %v374
    %1611 = vmatprep.subr.mxu0 %v378
    %1612 = vmatpush1.msra.mxu0 %v377
    %1613 = vmatprep.subr.mxu0 %v381
    %1614 = vmatpush1.msra.mxu0 %v380
    %1615 = vmatprep.subr.mxu0 %v384
    %1616 = vmatpush1.msra.mxu0 %v383
    %1617 = vmatprep.subr.mxu0 %v387
    %1618 = vmatpush1.msra.mxu0 %v386
    %1619 = vmatprep.subr.mxu0 %v390
    %1620 = vmatpush1.msra.mxu0 %v389
    %1621 = vmatprep.subr.mxu0 %v393
    %1622 = vmatpush1.msra.mxu0 %v392
    %1623 = vmatprep.subr.mxu0 %v396
    %1624 = vmatpush1.msra.mxu0 %v395
    %1625 = vmatprep.subr.mxu0 %v399
    %1626 = vmatpush1.msra.mxu0 %v398
    %1627 = vmatprep.subr.mxu0 %v402
    %1628 = vmatpush1.msra.mxu0 %v401
    %1629 = vmatprep.subr.mxu0 %v405
    %1630 = vmatpush1.msra.mxu0 %v404
    %1631 = vmatprep.subr.mxu0 %v408
    %1632 = vmatpush1.msra.mxu0 %v407
    %1633 = vmatprep.subr.mxu0 0.0
    %1634 = vmatpush1.msra.mxu0 0.0
    %1635 = vmatprep.subr.mxu0 0.0
    %1636 = vmatpush1.msra.mxu0 0.0
    %1637 = vmatprep.subr.mxu0 0.0
    %1638 = vmatpush1.msra.mxu0 0.0
    %1639 = vmatprep.subr.mxu0 0.0
    %1640 = vmatpush1.msra.mxu0 0.0
    %1641 = vmatprep.subr.mxu0 0.0
    %1642 = vmatpush1.msra.mxu0 0.0
    %1643 = vmatprep.subr.mxu0 0.0
    %1644 = vmatpush1.msra.mxu0 0.0
    %1645 = vmatprep.subr.mxu0 0.0
    %1646 = vmatpush1.msra.mxu0 0.0
    %1647 = vmatprep.subr.mxu0 0.0
    %1648 = vmatpush1.msra.mxu0 0.0
    %1649 = vmatprep.subr.mxu0 0.0
    %1650 = vmatpush1.msra.mxu0 0.0
    %1651 = vmatprep.subr.mxu0 0.0
    %1652 = vmatpush1.msra.mxu0 0.0
    %1653 = vmatprep.subr.mxu0 0.0
    %1654 = vmatpush1.msra.mxu0 0.0
    %1655 = vmatprep.subr.mxu0 0.0
    %1656 = vmatpush1.msra.mxu0 0.0
    %1657 = vmatprep.subr.mxu0 0.0
    %1658 = vmatpush1.msra.mxu0 0.0
    %1659 = vmatprep.subr.mxu0 0.0
    %1660 = vmatpush1.msra.mxu0 0.0
    %1661 = vmatprep.subr.mxu0 0.0
    %1662 = vmatpush1.msra.mxu0 0.0
    %1663 = vmatprep.subr.mxu0 0.0
    %1664 = vmatpush1.msra.mxu0 0.0
    %1665 = vmatprep.mubr.f32.mxu0 0.0
    %1666 = vmatmul.mubr.f32.gmra.mrb[0].mxu0 %v1595
    %v1667 = vpop.f32.mrb[0].mxu0
    %v1668 = vadd.f32 0.0, %v1667
    %v1669 = vpop.f32.mrb[0].mxu0
    %v1670 = vadd.f32 0.0, %v1669
    %1671 = vdwg.mxu0
    %1672 = vmatprep.subr.mxu0 0.0
    %1673 = vmatpush1.msra.mxu0 %v364
    %1674 = vmatprep.subr.mxu0 0.0
    %1675 = vmatpush1.msra.mxu0 %v367
    %1676 = vmatprep.subr.mxu0 0.0
    %1677 = vmatpush1.msra.mxu0 %v370
    %1678 = vmatprep.subr.mxu0 0.0
    %1679 = vmatpush1.msra.mxu0 %v373
    %1680 = vmatprep.subr.mxu0 0.0
    %1681 = vmatpush1.msra.mxu0 %v376
    %1682 = vmatprep.subr.mxu0 0.0
    %1683 = vmatpush1.msra.mxu0 %v379
    %1684 = vmatprep.subr.mxu0 0.0
    %1685 = vmatpush1.msra.mxu0 %v382
    %1686 = vmatprep.subr.mxu0 0.0
    %1687 = vmatpush1.msra.mxu0 %v385
    %1688 = vmatprep.subr.mxu0 0.0
    %1689 = vmatpush1.msra.mxu0 %v388
    %1690 = vmatprep.subr.mxu0 0.0
    %1691 = vmatpush1.msra.mxu0 %v391
    %1692 = vmatprep.subr.mxu0 0.0
    %1693 = vmatpush1.msra.mxu0 %v394
    %1694 = vmatprep.subr.mxu0 0.0
    %1695 = vmatpush1.msra.mxu0 %v397
    %1696 = vmatprep.subr.mxu0 0.0
    %1697 = vmatpush1.msra.mxu0 %v400
    %1698 = vmatprep.subr.mxu0 0.0
    %1699 = vmatpush1.msra.mxu0 %v403
    %1700 = vmatprep.subr.mxu0 0.0
    %1701 = vmatpush1.msra.mxu0 %v406
    %1702 = vmatprep.subr.mxu0 0.0
    %1703 = vmatpush1.msra.mxu0 %v409
    %1704 = vmatprep.subr.mxu0 0.0
    %1705 = vmatpush1.msra.mxu0 0.0
    %1706 = vmatprep.subr.mxu0 0.0
    %1707 = vmatpush1.msra.mxu0 0.0
    %1708 = vmatprep.subr.mxu0 0.0
    %1709 = vmatpush1.msra.mxu0 0.0
    %1710 = vmatprep.subr.mxu0 0.0
    %1711 = vmatpush1.msra.mxu0 0.0
    %1712 = vmatprep.subr.mxu0 0.0
    %1713 = vmatpush1.msra.mxu0 0.0
    %1714 = vmatprep.subr.mxu0 0.0
    %1715 = vmatpush1.msra.mxu0 0.0
    %1716 = vmatprep.subr.mxu0 0.0
    %1717 = vmatpush1.msra.mxu0 0.0
    %1718 = vmatprep.subr.mxu0 0.0
    %1719 = vmatpush1.msra.mxu0 0.0
    %1720 = vmatprep.subr.mxu0 0.0
    %1721 = vmatpush1.msra.mxu0 0.0
    %1722 = vmatprep.subr.mxu0 0.0
    %1723 = vmatpush1.msra.mxu0 0.0
    %1724 = vmatprep.subr.mxu0 0.0
    %1725 = vmatpush1.msra.mxu0 0.0
    %1726 = vmatprep.subr.mxu0 0.0
    %1727 = vmatpush1.msra.mxu0 0.0
    %1728 = vmatprep.subr.mxu0 0.0
    %1729 = vmatpush1.msra.mxu0 0.0
    %1730 = vmatprep.subr.mxu0 0.0
    %1731 = vmatpush1.msra.mxu0 0.0
    %1732 = vmatprep.subr.mxu0 0.0
    %1733 = vmatpush1.msra.mxu0 0.0
    %1734 = vmatprep.subr.mxu0 0.0
    %1735 = vmatpush1.msra.mxu0 0.0
    %1736 = vmatprep.mubr.f32.mxu0 0.0
    %1737 = vmatmul.mubr.f32.gmra.mrb[0].mxu0 %v1595
    %v1738 = vpop.f32.mrb[0].mxu0
    %v1739 = vadd.f32 0.0, %v1738
    %v1740 = vpop.f32.mrb[0].mxu0
    %1741 = vdwg.mxu0
    %v1742 = vadd.f32 %v1598, %v1668
    %v1743 = vxor.u32 %v1742, 2147483648
    %v1744 = vmul.f32 %v1743, 1.442695
    %v1745 = vpow.pop %v1744
    %v1746 = vadd.f32 %v1745, 1.0
    %v1747 = vrcp.pop %v1746
    %v1748 = vmul.f32 1.0, %v1747
    %v1749 = vadd.f32 %v1599, %v1670
    %v1750 = vxor.u32 %v1749, 2147483648
    %v1751 = vmul.f32 %v1750, 1.442695
    %v1752 = vpow.pop %v1751
    %v1753 = vadd.f32 %v1752, 1.0
    %v1754 = vrcp.pop %v1753
    %v1755 = vmul.f32 1.0, %v1754
    %v1756 = vadd.f32 %v1739, %v415
    %v1757 = vmul.f32 %v1748, %v1756
    %v1758 = vadd.f32 %v1600, %v1757
    %v1759 = vtanh.pop %v1758
    %v1760 = vsub.f32 1.0, %v1755
    %v1761 = vmul.f32 %v1760, %v1759
    %v1762 = vmul.f32 %v1755, %v1595
    %v1763 = vadd.f32 %v1761, %v1762
    %vm1764 = vcmp.eq.s32.totalorder %v420, 7
    %v1765 = vsel %vm1764, %v1763, %v1597
    %v1766 = vld [vmem:[#allocation6] sm:$0xff]
    %v1767 = vld [vmem:[#allocation6 + $0x8] sm:$0xff]
    %v1768 = vld [vmem:[#allocation6 + $0x10] sm:$0xff]
    %v1769 = vld [vmem:[#allocation6 + $0x18] sm:$0xff]
    %v1770 = vld [vmem:[#allocation6 + $0x20] sm:$0xff]
    %v1771 = vld [vmem:[#allocation6 + $0x28] sm:$0xff]
    %v1772 = vld [vmem:[#allocation6 + $0x30] sm:$0xff]
    %v1773 = vld [vmem:[#allocation6 + $0x38] sm:$0xff]
    %v1774 = vld [vmem:[#allocation6 + $0x40] sm:$0xff]
    %v1775 = vld [vmem:[#allocation6 + $0x48] sm:$0xff]
    %v1776 = vld [vmem:[#allocation6 + $0x50] sm:$0xff]
    %v1777 = vld [vmem:[#allocation6 + $0x58] sm:$0xff]
    %v1778 = vld [vmem:[#allocation6 + $0x60] sm:$0xff]
    %v1779 = vld [vmem:[#allocation6 + $0x68] sm:$0xff]
    %v1780 = vld [vmem:[#allocation6 + $0x70] sm:$0xff]
    %v1781 = vld [vmem:[#allocation6 + $0x78] sm:$0xff]
    %v1782 = vld [vmem:[%s8] sm:$0x1]
    %v1784 = vlaneseq
    %v1785 = vshrl.u32 %v1784, 7
    %v1786 = vsub.s32 0, %v1785
    %v1787 = vrot.slane %v1782, %v1786
    %1789 = vmatprep.subr.mxu0 0.0
    %1790 = vmatpush1.msra.mxu0 %v1766
    %1791 = vmatprep.subr.mxu0 0.0
    %1792 = vmatpush1.msra.mxu0 %v1767
    %1793 = vmatprep.subr.mxu0 0.0
    %1794 = vmatpush1.msra.mxu0 %v1768
    %1795 = vmatprep.subr.mxu0 0.0
    %1796 = vmatpush1.msra.mxu0 %v1769
    %1797 = vmatprep.subr.mxu0 0.0
    %1798 = vmatpush1.msra.mxu0 %v1770
    %1799 = vmatprep.subr.mxu0 0.0
    %1800 = vmatpush1.msra.mxu0 %v1771
    %1801 = vmatprep.subr.mxu0 0.0
    %1802 = vmatpush1.msra.mxu0 %v1772
    %1803 = vmatprep.subr.mxu0 0.0
    %1804 = vmatpush1.msra.mxu0 %v1773
    %1805 = vmatprep.subr.mxu0 0.0
    %1806 = vmatpush1.msra.mxu0 %v1774
    %1807 = vmatprep.subr.mxu0 0.0
    %1808 = vmatpush1.msra.mxu0 %v1775
    %1809 = vmatprep.subr.mxu0 0.0
    %1810 = vmatpush1.msra.mxu0 %v1776
    %1811 = vmatprep.subr.mxu0 0.0
    %1812 = vmatpush1.msra.mxu0 %v1777
    %1813 = vmatprep.subr.mxu0 0.0
    %1814 = vmatpush1.msra.mxu0 %v1778
    %1815 = vmatprep.subr.mxu0 0.0
    %1816 = vmatpush1.msra.mxu0 %v1779
    %1817 = vmatprep.subr.mxu0 0.0
    %1818 = vmatpush1.msra.mxu0 %v1780
    %1819 = vmatprep.subr.mxu0 0.0
    %1820 = vmatpush1.msra.mxu0 %v1781
    %1821 = vmatprep.subr.mxu0 0.0
    %1822 = vmatpush1.msra.mxu0 0.0
    %1823 = vmatprep.subr.mxu0 0.0
    %1824 = vmatpush1.msra.mxu0 0.0
    %1825 = vmatprep.subr.mxu0 0.0
    %1826 = vmatpush1.msra.mxu0 0.0
    %1827 = vmatprep.subr.mxu0 0.0
    %1828 = vmatpush1.msra.mxu0 0.0
    %1829 = vmatprep.subr.mxu0 0.0
    %1830 = vmatpush1.msra.mxu0 0.0
    %1831 = vmatprep.subr.mxu0 0.0
    %1832 = vmatpush1.msra.mxu0 0.0
    %1833 = vmatprep.subr.mxu0 0.0
    %1834 = vmatpush1.msra.mxu0 0.0
    %1835 = vmatprep.subr.mxu0 0.0
    %1836 = vmatpush1.msra.mxu0 0.0
    %1837 = vmatprep.subr.mxu0 0.0
    %1838 = vmatpush1.msra.mxu0 0.0
    %1839 = vmatprep.subr.mxu0 0.0
    %1840 = vmatpush1.msra.mxu0 0.0
    %1841 = vmatprep.subr.mxu0 0.0
    %1842 = vmatpush1.msra.mxu0 0.0
    %1843 = vmatprep.subr.mxu0 0.0
    %1844 = vmatpush1.msra.mxu0 0.0
    %1845 = vmatprep.subr.mxu0 0.0
    %1846 = vmatpush1.msra.mxu0 0.0
    %1847 = vmatprep.subr.mxu0 0.0
    %1848 = vmatpush1.msra.mxu0 0.0
    %1849 = vmatprep.subr.mxu0 0.0
    %1850 = vmatpush1.msra.mxu0 0.0
    %1851 = vmatprep.subr.mxu0 0.0
    %1852 = vmatpush1.msra.mxu0 0.0
    %1853 = vmatprep.mubr.f32.mxu0 0.0
    %1854 = vmatmul.mubr.f32.gmra.mrb[0].mxu0 %v1765
    %v1855 = vpop.f32.mrb[0].mxu0
    %v1856 = vadd.f32 %v1787, %v1855
    %v1857 = vpop.f32.mrb[0].mxu0
    %1858 = vdwg.mxu0
    %v1859 = vxor.u32 %v1856, 2147483648
    %v1860 = vmul.f32 %v1859, 1.442695
    %v1861 = vpow.pop %v1860
    %v1862 = vadd.f32 %v1861, 1.0
    %v1863 = vrcp.pop %v1862
    %v1864 = vmul.f32 1.0, %v1863
    %1865 = vst [vmem:[#allocation8] sm:$0xff] %v1864
    %1866 = vst [vmem:[#allocation9] sm:$0xff] %v1763
    // Predicated region
    $region46: #{tpu_custom_call.1} parent=1 // pred_check
      _
    $region47: #{tpu_custom_call.1} parent=1 // pred_check_branch
      %1868 = sbr.rel (0) target = $region49
    $region48: #{tpu_custom_call.1} parent=1 // pred_region
      %s1870 = ssub.s32 128, 128
      %1871 = vsyncadd [#allocation5], %s1870
      %s1873 = sshll.u32 [#allocation8], 4
      %s1874 = int_to_ptr.vmem [resolvable:$true] %s1873
      %1876 = dma.vmem_to_hbm [thread:$0]  %s1874, 128, %s9, [#allocation5]
    $region49: #{tpu_custom_call.1} parent=1 // pred_fallthru
      _
    // Predicated region
    $region50: #{tpu_custom_call.1} parent=1 // pred_check
      _
    $region51: #{tpu_custom_call.1} parent=1 // pred_check_branch
      %1878 = sbr.rel (0) target = $region53
    $region52: #{tpu_custom_call.1} parent=1 // pred_region
      %s1880 = ssub.s32 128, 128
      %1881 = vsyncadd [#allocation10], %s1880
      %s1883 = sshll.u32 [#allocation9], 4
      %s1884 = int_to_ptr.vmem [resolvable:$true] %s1883
      %1886 = dma.vmem_to_hbm [thread:$0]  %s1884, 128, %s10, [#allocation10]
    $region53: #{tpu_custom_call.1} parent=1 // pred_fallthru
      _
    // Predicated region
    $region54: #{tpu_custom_call.1} parent=1 // pred_check
      _
    $region55: #{tpu_custom_call.1} parent=1 // pred_check_branch
      %1888 = sbr.rel (0) target = $region57
    $region56: #{tpu_custom_call.1} parent=1 // pred_region
      %1889 = dma.done [#allocation5], 128
    $region57: #{tpu_custom_call.1} parent=1 // pred_fallthru
      _
    // Predicated region
    $region58: #{tpu_custom_call.1} parent=1 // pred_check
      _
    $region59: #{tpu_custom_call.1} parent=1 // pred_check_branch
      %1891 = sbr.rel (0) target = $region61
    $region60: #{tpu_custom_call.1} parent=1 // pred_region
      %1892 = dma.done [#allocation10], 128
    $region61: #{tpu_custom_call.1} parent=1 // pred_fallthru
      _
    %1893 = vsyncpa [#allocation4], 1
    %1894 = vsyncpa [#allocation7], 1
    %1895 = vsyncpa [#allocation5], 1
    %1896 = vsyncpa [#allocation10], 1

</llo_original>
